<compile_context>
chip_gen: v7x
topology: tpu7x:2x2x1
jax: 0.10.0
libtpu: 0.0.40
codegen_flags: <defaults>
</compile_context>

<pallas_src>
import functools

import jax
import jax.numpy as jnp
from jax import lax
from jax.experimental import pallas as pl
from jax.experimental.pallas import tpu as pltpu

# ----------------------------- configuration --------------------------------
M_MOMENTUM = 0.99
TEMP = 1.0
FEAT_DIM = 64          # conv-stem output channels (ResNet conv1 has 64)
HIDDEN = 256           # TODO(synk): reference MLP heads use 2048; scaled down
OUT_DIM = 128          # intra_dim == inter_dim == 128 (module defaults)
KSIZE, STRIDE, PAD = 7, 2, 3

# Head stacking order: q-side heads rows 0..3, k-side heads rows 4..7, ordered by
# contrastive-loss pair:
#   pair 0: vis intra   (q=row0, k=row4)     pair 2: vis_q inter vs tac_k inter (2, 6)
#   pair 1: tac intra   (q=row1, k=row5)     pair 3: tac_q inter vs vis_k inter (3, 7)
HEAD_ORDER = (("vision_q", "intra"), ("tactile_q", "intra"),
              ("vision_q", "inter"), ("tactile_q", "inter"),
              ("vision_k", "intra"), ("tactile_k", "intra"),
              ("tactile_k", "inter"), ("vision_k", "inter"))
# Encoder feature stream feeding each head (0=vision_q, 1=vision_k, 2=tactile_q, 3=tactile_k).
HEAD_FEAT_IDX = (0, 2, 0, 2, 1, 3, 3, 1)


# ------------------------------ Pallas kernels -------------------------------
def fused_forward_kernel(vis_p_ref, tac_p_ref, vis_w_ref, tac_w_ref,
                         w1_ref, b1_ref, w2_ref, b2_ref,
                         loss_ref, logits_ref, *, batch, T, weights):
    """Encoders + MLP heads + contrastive losses, fully fused in one invocation.

    vis_p_ref : (2, B*P, Kv) bf16   im2col patches, rows 0/1 = vision q/k
    tac_p_ref : (2, B*P, Kt) bf16   rows 0/1 = tactile q/k
    vis_w_ref : (2, Kv, 64)  bf16   conv1 weights in matmul form (q, k)
    tac_w_ref : (2, Kt, 64)  bf16
    w1/b1/w2/b2 : stacked head params for the 8 heads in HEAD_ORDER
    loss_ref  : (8, 128) f32 out    rows 0..3 per-pair losses, row 4 combined
    logits_ref: (4, B, B) f32 out   per-pair logits, stacked in pair order
    """
    # ---- encoders: conv1-as-matmul -> ReLU -> global average pool (4 streams) ----
    feats = []
    for s in range(4):
        if s < 2:
            p, w = vis_p_ref[s], vis_w_ref[s]
        else:
            p, w = tac_p_ref[s - 2], tac_w_ref[s - 2]
        y = jnp.dot(p, w, preferred_element_type=jnp.float32)        # (B*P, 64) f32
        y = jnp.maximum(y, 0.0)                                      # ReLU (f32, v5e-safe)
        pool = y.shape[0] // batch
        # Global average pool as a reshape + sublane sum (no pool-matrix matmul).
        feat = y.reshape(batch, pool, y.shape[1]).sum(axis=1) * (1.0 / pool)
        feats.append(feat)                                           # (B, 64) f32

    # ---- 8 MLP heads (4 encoders x {intra, inter}) ----
    outs = []
    for h in range(8):
        x = feats[HEAD_FEAT_IDX[h]].astype(jnp.bfloat16)
        hid = jnp.dot(x, w1_ref[h], preferred_element_type=jnp.float32) + b1_ref[h]
        hid = jnp.maximum(hid, 0.0)                                  # ReLU
        # TODO(synk): nn.Dropout(0.5) treated as eval-mode identity.
        o = jnp.dot(hid.astype(jnp.bfloat16), w2_ref[h],
                    preferred_element_type=jnp.float32) + b2_ref[h]
        outs.append(o)                                               # (B, 128) f32

    # ---- 4 contrastive losses + weighted combined loss ----
    inv_T = 1.0 / T
    per_pair = []
    combined = jnp.float32(0.0)
    for i in range(4):
        q, k = outs[i], outs[4 + i]
        # F.normalize(x, dim=1): x * rsqrt(max(sum(x^2), eps^2)); rsqrt runs on the EUP.
        qn = q * lax.rsqrt(jnp.maximum(jnp.sum(q * q, axis=1, keepdims=True), 1e-24))
        kn = k * lax.rsqrt(jnp.maximum(jnp.sum(k * k, axis=1, keepdims=True), 1e-24))
        logits = lax.dot_general(qn, kn, (((1,), (1,)), ((), ())),
                                 preferred_element_type=jnp.float32) * inv_T   # (B, B)
        # Positive-pair logit computed directly (no (B,B) iota/where diag extraction).
        diag = jnp.sum(qn * kn, axis=1, keepdims=True) * inv_T                 # (B, 1)
        mx = jnp.max(logits, axis=1, keepdims=True)
        lse = mx + jnp.log(jnp.sum(jnp.exp(logits - mx), axis=1, keepdims=True))
        li = jnp.sum(lse - diag) * (1.0 / batch)    # CrossEntropy(mean), labels=arange(B)
        per_pair.append(li)
        combined = combined + weights[i] * li
        logits_ref[i] = logits
        # TODO(synk): at realistic B, pad the logits last dim to a 128-lane multiple
        #             (lane-dense stores) and turn this loop into a grid axis.

    # Scatter the 5 scalars into one lane-dense (8, 128) tile.
    rowid = lax.broadcasted_iota(jnp.int32, loss_ref.shape, 0)
    acc = jnp.zeros(loss_ref.shape, jnp.float32)
    for i, li in enumerate(per_pair):
        acc = acc + jnp.where(rowid == i, li, 0.0)
    acc = acc + jnp.where(rowid == 4, combined, 0.0)
    loss_ref[...] = acc


def _momentum_ema_kernel(*refs, m, n):
    """k <- m*k + (1-m)*q for n leaf pairs; refs = q_0..q_{n-1}, k_0..k_{n-1}, out_0..out_{n-1}."""
    for i in range(n):
        q, k, o = refs[i], refs[n + i], refs[2 * n + i]
        o[...] = k[...] * m + q[...] * (1.0 - m)


# ------------------------------ JAX glue / wrappers --------------------------
def prep_patches(x_nchw):
    """(N, C, H, W) -> (N*OH*OW, C*K*K) im2col patches, (c, ky, kx) ordering, tight K."""
    p = lax.conv_general_dilated_patches(
        x_nchw, filter_shape=(KSIZE, KSIZE), window_strides=(STRIDE, STRIDE),
        padding=((PAD, PAD), (PAD, PAD)))                 # (N, C*K*K, OH, OW)
    n, ckk, oh, ow = p.shape
    return p.transpose(0, 2, 3, 1).reshape(n * oh * ow, ckk)


def fused_forward(vis_p, tac_p, vis_w, tac_w, w1, b1, w2, b2, *, batch, T, weights):
    vmem = pl.BlockSpec(memory_space=pltpu.MemorySpace.VMEM)   # full-array VMEM blocks
    return pl.pallas_call(
        functools.partial(fused_forward_kernel, batch=batch, T=T, weights=tuple(weights)),
        out_shape=(jax.ShapeDtypeStruct((8, 128), jnp.float32),
                   jax.ShapeDtypeStruct((4, batch, batch), jnp.float32)),
        in_specs=[vmem] * 8,
        out_specs=(vmem, vmem),
    )(vis_p, tac_p, vis_w, tac_w, w1, b1, w2, b2)


def fused_momentum_update(q_leaves, k_leaves, m):
    """EMA of all leaf pairs in one gridless pallas_call, key leaves updated in place.

    Every leaf here is <= ~130 KiB so full-array VMEM blocks are fine on all generations.
    TODO(synk): at full ResNet18/50 sizes, leaves above a few MiB need a row-tiled
                ("parallel") grid over (tile, 128) blocks instead of full-array blocks.
    """
    n = len(q_leaves)
    out_shape = tuple(jax.ShapeDtypeStruct(l.shape, l.dtype) for l in k_leaves)
    new_leaves = pl.pallas_call(
        functools.partial(_momentum_ema_kernel, m=m, n=n),
        out_shape=out_shape,
        input_output_aliases={n + i: i for i in range(n)},   # k_i aliased to out_i
    )(*q_leaves, *k_leaves)
    return list(new_leaves)


def momentum_update_key_encoders(params, m):
    """k <- m*k + (1-m)*q for base conv + intra head of both key encoders (one launch)."""
    q_leaves, k_leaves, slots = [], [], []
    for mod in ("vision", "tactile"):
        qd, kd = params[f"{mod}_q"], params[f"{mod}_k"]
        q_leaves.append(qd["conv"]); k_leaves.append(kd["conv"])
        slots.append((f"{mod}_k", "conv", None))
        for j in range(4):
            q_leaves.append(qd["intra"][j]); k_leaves.append(kd["intra"][j])
            slots.append((f"{mod}_k", "intra", j))
    new_leaves = fused_momentum_update(q_leaves, k_leaves, m)
    new_params = {enc: {"conv": d["conv"],
                        "intra": list(d["intra"]),
                        "inter": tuple(d["inter"])} for enc, d in params.items()}
    for (enc, part, j), leaf in zip(slots, new_leaves):
        if part == "conv":
            new_params[enc]["conv"] = leaf
        else:
            new_params[enc]["intra"][j] = leaf
    for enc in new_params:
        new_params[enc]["intra"] = tuple(new_params[enc]["intra"])
    return new_params


# ------------------------------ parameter init -------------------------------
def init_head(key, in_dim):
    k1, k2 = jax.random.split(key)
    w1 = jax.random.normal(k1, (in_dim, HIDDEN), jnp.float32) * 0.05
    b1 = jnp.zeros((1, HIDDEN), jnp.float32)
    w2 = jax.random.normal(k2, (HIDDEN, OUT_DIM), jnp.float32) * 0.05
    b2 = jnp.zeros((1, OUT_DIM), jnp.float32)
    return (w1, b1, w2, b2)


def init_encoder(key, n_channels):
    kc, ki, ke = jax.random.split(key, 3)
    conv = jax.random.normal(kc, (FEAT_DIM, n_channels, KSIZE, KSIZE), jnp.float32) * 0.05
    # conv-as-matmul weight, (c, ky, kx) ordering matching the im2col patches; tight K.
    w = conv.reshape(FEAT_DIM, n_channels * KSIZE * KSIZE).T          # (C*K*K, 64)
    return {"conv": w, "intra": init_head(ki, FEAT_DIM), "inter": init_head(ke, FEAT_DIM)}


def init_multimodal_moco(key, n_channels_tactile):
    kvq, kvk, ktq, ktk = jax.random.split(key, 4)
    params = {
        "vision_q": init_encoder(kvq, 3),
        "vision_k": init_encoder(kvk, 3),
        "tactile_q": init_encoder(ktq, n_channels_tactile),
        "tactile_k": init_encoder(ktk, n_channels_tactile),
    }
    # The reference module's __init__ applies momentum_update_key_encoder (EMA with m)
    # to conv + intra heads of the key encoders — NOT an exact q->k copy — so we do
    # the same to match the spec.
    return momentum_update_key_encoders(params, M_MOMENTUM)


# --------------------------------- forward -----------------------------------
def forward(params, x_vision_q, x_vision_k, x_tactile_q, x_tactile_k,
            m=M_MOMENTUM, T=TEMP,
            weight_intra_vision=1.0, weight_intra_tactile=1.0,
            weight_inter_tac_vis=1.0, weight_inter_vis_tac=1.0):
    B = x_vision_q.shape[0]

    # im2col patches (tight K per modality) and bf16 MXU operands; f32 master params.
    vis_p = jnp.stack([prep_patches(x_vision_q), prep_patches(x_vision_k)]).astype(jnp.bfloat16)
    tac_p = jnp.stack([prep_patches(x_tactile_q), prep_patches(x_tactile_k)]).astype(jnp.bfloat16)
    vis_w = jnp.stack([params["vision_q"]["conv"], params["vision_k"]["conv"]]).astype(jnp.bfloat16)
    tac_w = jnp.stack([params["tactile_q"]["conv"], params["tactile_k"]["conv"]]).astype(jnp.bfloat16)
    w1 = jnp.stack([params[e][h][0] for e, h in HEAD_ORDER]).astype(jnp.bfloat16)
    b1 = jnp.stack([params[e][h][1] for e, h in HEAD_ORDER])
    w2 = jnp.stack([params[e][h][2] for e, h in HEAD_ORDER]).astype(jnp.bfloat16)
    b2 = jnp.stack([params[e][h][3] for e, h in HEAD_ORDER])

    # Combination order matches the module: w_intra_vision*vis_intra + w_intra_tactile*tac_intra
    # + w_inter_tac_vis*vis_tac_inter + w_inter_vis_tac*tac_vis_inter.
    weights = (weight_intra_vision, weight_intra_tactile,
               weight_inter_tac_vis, weight_inter_vis_tac)

    loss_tile, logits4 = fused_forward(vis_p, tac_p, vis_w, tac_w, w1, b1, w2, b2,
                                       batch=B, T=T, weights=weights)
    vis_loss_intra = loss_tile[0, 0]
    tac_loss_intra = loss_tile[1, 0]
    vis_tac_inter = loss_tile[2, 0]
    tac_vis_inter = loss_tile[3, 0]
    combined_loss = loss_tile[4, 0]
    logits = logits4.reshape(4 * B, B)
    labels = jnp.tile(jnp.arange(B, dtype=jnp.int32), 4)    # torch.long -> int32

    # End-of-forward momentum update of the key encoders (base conv + intra head),
    # matching the reference momentum_update_key_encoder calls.
    new_params = momentum_update_key_encoders(params, m)

    return (combined_loss, vis_loss_intra, tac_loss_intra,
            vis_tac_inter, tac_vis_inter, logits, labels, new_params)


# ----------------------------------- main -------------------------------------
if __name__ == "__main__":
    key = jax.random.PRNGKey(0)
    kp, k1, k2, k3, k4 = jax.random.split(key, 5)

    n_channels_tactile = 4
    params = init_multimodal_moco(kp, n_channels_tactile)

    B, H, W = 2, 16, 16
    x_vision_q = jax.random.normal(k1, (B, 3, H, W), jnp.float32)
    x_vision_k = jax.random.normal(k2, (B, 3, H, W), jnp.float32)
    x_tactile_q = jax.random.normal(k3, (B, n_channels_tactile, H, W), jnp.float32)
    x_tactile_k = jax.random.normal(k4, (B, n_channels_tactile, H, W), jnp.float32)

    fwd = jax.jit(forward)
    outs = jax.block_until_ready(fwd(params, x_vision_q, x_vision_k, x_tactile_q, x_tactile_k))

    combined_loss, v_intra, t_intra, vt_inter, tv_inter, logits, labels, _ = outs
    assert logits.shape == (4 * B, B)
    assert labels.shape == (4 * B,)
    assert bool(jnp.isfinite(combined_loss))
    print("KERNEL_OK")
</pallas_src>

<mosaic_0001>
module attributes {stable_mosaic.version = 11 : i64} {
  func.func @_momentum_ema_kernel(%arg0: memref<147x64xf32, #tpu.memory_space<vmem>>, %arg1: memref<64x256xf32, #tpu.memory_space<vmem>>, %arg2: memref<1x256xf32, #tpu.memory_space<vmem>>, %arg3: memref<256x128xf32, #tpu.memory_space<vmem>>, %arg4: memref<1x128xf32, #tpu.memory_space<vmem>>, %arg5: memref<196x64xf32, #tpu.memory_space<vmem>>, %arg6: memref<64x256xf32, #tpu.memory_space<vmem>>, %arg7: memref<1x256xf32, #tpu.memory_space<vmem>>, %arg8: memref<256x128xf32, #tpu.memory_space<vmem>>, %arg9: memref<1x128xf32, #tpu.memory_space<vmem>>, %arg10: memref<147x64xf32, #tpu.memory_space<vmem>>, %arg11: memref<64x256xf32, #tpu.memory_space<vmem>>, %arg12: memref<1x256xf32, #tpu.memory_space<vmem>>, %arg13: memref<256x128xf32, #tpu.memory_space<vmem>>, %arg14: memref<1x128xf32, #tpu.memory_space<vmem>>, %arg15: memref<196x64xf32, #tpu.memory_space<vmem>>, %arg16: memref<64x256xf32, #tpu.memory_space<vmem>>, %arg17: memref<1x256xf32, #tpu.memory_space<vmem>>, %arg18: memref<256x128xf32, #tpu.memory_space<vmem>>, %arg19: memref<1x128xf32, #tpu.memory_space<vmem>>, %arg20: memref<147x64xf32, #tpu.memory_space<vmem>>, %arg21: memref<64x256xf32, #tpu.memory_space<vmem>>, %arg22: memref<1x256xf32, #tpu.memory_space<vmem>>, %arg23: memref<256x128xf32, #tpu.memory_space<vmem>>, %arg24: memref<1x128xf32, #tpu.memory_space<vmem>>, %arg25: memref<196x64xf32, #tpu.memory_space<vmem>>, %arg26: memref<64x256xf32, #tpu.memory_space<vmem>>, %arg27: memref<1x256xf32, #tpu.memory_space<vmem>>, %arg28: memref<256x128xf32, #tpu.memory_space<vmem>>, %arg29: memref<1x128xf32, #tpu.memory_space<vmem>>) attributes {dimension_semantics = [], scalar_prefetch = 0 : i64, scratch_operands = 0 : i64, tpu.core_type = #tpu.core_type<tc>} {
    %c0 = arith.constant 0 : index
    %c0_0 = arith.constant 0 : index
    %0 = vector.load %arg10[%c0, %c0_0] : memref<147x64xf32, #tpu.memory_space<vmem>>, vector<147x64xf32>
    %cst = arith.constant 9.900000e-01 : f32
    %1 = vector.broadcast %cst : f32 to vector<147x64xf32>
    %2 = arith.mulf %0, %1 : vector<147x64xf32>
    %c0_1 = arith.constant 0 : index
    %c0_2 = arith.constant 0 : index
    %3 = vector.load %arg0[%c0_1, %c0_2] : memref<147x64xf32, #tpu.memory_space<vmem>>, vector<147x64xf32>
    %cst_3 = arith.constant 0.00999999977 : f32
    %4 = vector.broadcast %cst_3 : f32 to vector<147x64xf32>
    %5 = arith.mulf %3, %4 : vector<147x64xf32>
    %6 = arith.addf %2, %5 : vector<147x64xf32>
    %c0_4 = arith.constant 0 : index
    %c0_5 = arith.constant 0 : index
    %7 = vector.load %arg20[%c0_4, %c0_5] : memref<147x64xf32, #tpu.memory_space<vmem>>, vector<147x64xf32>
    tpu.vector_store %arg20[%c0_4, %c0_5], %6 {strides = array<i32>} : memref<147x64xf32, #tpu.memory_space<vmem>>, vector<147x64xf32>,
    %c0_6 = arith.constant 0 : index
    %c0_7 = arith.constant 0 : index
    %8 = vector.load %arg11[%c0_6, %c0_7] : memref<64x256xf32, #tpu.memory_space<vmem>>, vector<64x256xf32>
    %cst_8 = arith.constant 9.900000e-01 : f32
    %9 = vector.broadcast %cst_8 : f32 to vector<64x256xf32>
    %10 = arith.mulf %8, %9 : vector<64x256xf32>
    %c0_9 = arith.constant 0 : index
    %c0_10 = arith.constant 0 : index
    %11 = vector.load %arg1[%c0_9, %c0_10] : memref<64x256xf32, #tpu.memory_space<vmem>>, vector<64x256xf32>
    %cst_11 = arith.constant 0.00999999977 : f32
    %12 = vector.broadcast %cst_11 : f32 to vector<64x256xf32>
    %13 = arith.mulf %11, %12 : vector<64x256xf32>
    %14 = arith.addf %10, %13 : vector<64x256xf32>
    %c0_12 = arith.constant 0 : index
    %c0_13 = arith.constant 0 : index
    %15 = vector.load %arg21[%c0_12, %c0_13] : memref<64x256xf32, #tpu.memory_space<vmem>>, vector<64x256xf32>
    tpu.vector_store %arg21[%c0_12, %c0_13], %14 {strides = array<i32>} : memref<64x256xf32, #tpu.memory_space<vmem>>, vector<64x256xf32>,
    %c0_14 = arith.constant 0 : index
    %c0_15 = arith.constant 0 : index
    %16 = vector.load %arg12[%c0_14, %c0_15] : memref<1x256xf32, #tpu.memory_space<vmem>>, vector<1x256xf32>
    %cst_16 = arith.constant 9.900000e-01 : f32
    %17 = vector.broadcast %cst_16 : f32 to vector<1x256xf32>
    %18 = arith.mulf %16, %17 : vector<1x256xf32>
    %c0_17 = arith.constant 0 : index
    %c0_18 = arith.constant 0 : index
    %19 = vector.load %arg2[%c0_17, %c0_18] : memref<1x256xf32, #tpu.memory_space<vmem>>, vector<1x256xf32>
    %cst_19 = arith.constant 0.00999999977 : f32
    %20 = vector.broadcast %cst_19 : f32 to vector<1x256xf32>
    %21 = arith.mulf %19, %20 : vector<1x256xf32>
    %22 = arith.addf %18, %21 : vector<1x256xf32>
    %c0_20 = arith.constant 0 : index
    %c0_21 = arith.constant 0 : index
    %23 = vector.load %arg22[%c0_20, %c0_21] : memref<1x256xf32, #tpu.memory_space<vmem>>, vector<1x256xf32>
    tpu.vector_store %arg22[%c0_20, %c0_21], %22 {strides = array<i32>} : memref<1x256xf32, #tpu.memory_space<vmem>>, vector<1x256xf32>,
    %c0_22 = arith.constant 0 : index
    %c0_23 = arith.constant 0 : index
    %24 = vector.load %arg13[%c0_22, %c0_23] : memref<256x128xf32, #tpu.memory_space<vmem>>, vector<256x128xf32>
    %cst_24 = arith.constant 9.900000e-01 : f32
    %25 = vector.broadcast %cst_24 : f32 to vector<256x128xf32>
    %26 = arith.mulf %24, %25 : vector<256x128xf32>
    %c0_25 = arith.constant 0 : index
    %c0_26 = arith.constant 0 : index
    %27 = vector.load %arg3[%c0_25, %c0_26] : memref<256x128xf32, #tpu.memory_space<vmem>>, vector<256x128xf32>
    %cst_27 = arith.constant 0.00999999977 : f32
    %28 = vector.broadcast %cst_27 : f32 to vector<256x128xf32>
    %29 = arith.mulf %27, %28 : vector<256x128xf32>
    %30 = arith.addf %26, %29 : vector<256x128xf32>
    %c0_28 = arith.constant 0 : index
    %c0_29 = arith.constant 0 : index
    %31 = vector.load %arg23[%c0_28, %c0_29] : memref<256x128xf32, #tpu.memory_space<vmem>>, vector<256x128xf32>
    tpu.vector_store %arg23[%c0_28, %c0_29], %30 {strides = array<i32>} : memref<256x128xf32, #tpu.memory_space<vmem>>, vector<256x128xf32>,
    %c0_30 = arith.constant 0 : index
    %c0_31 = arith.constant 0 : index
    %32 = vector.load %arg14[%c0_30, %c0_31] : memref<1x128xf32, #tpu.memory_space<vmem>>, vector<1x128xf32>
    %cst_32 = arith.constant 9.900000e-01 : f32
    %33 = vector.broadcast %cst_32 : f32 to vector<1x128xf32>
    %34 = arith.mulf %32, %33 : vector<1x128xf32>
    %c0_33 = arith.constant 0 : index
    %c0_34 = arith.constant 0 : index
    %35 = vector.load %arg4[%c0_33, %c0_34] : memref<1x128xf32, #tpu.memory_space<vmem>>, vector<1x128xf32>
    %cst_35 = arith.constant 0.00999999977 : f32
    %36 = vector.broadcast %cst_35 : f32 to vector<1x128xf32>
    %37 = arith.mulf %35, %36 : vector<1x128xf32>
    %38 = arith.addf %34, %37 : vector<1x128xf32>
    %c0_36 = arith.constant 0 : index
    %c0_37 = arith.constant 0 : index
    %39 = vector.load %arg24[%c0_36, %c0_37] : memref<1x128xf32, #tpu.memory_space<vmem>>, vector<1x128xf32>
    tpu.vector_store %arg24[%c0_36, %c0_37], %38 {strides = array<i32>} : memref<1x128xf32, #tpu.memory_space<vmem>>, vector<1x128xf32>,
    %c0_38 = arith.constant 0 : index
    %c0_39 = arith.constant 0 : index
    %40 = vector.load %arg15[%c0_38, %c0_39] : memref<196x64xf32, #tpu.memory_space<vmem>>, vector<196x64xf32>
    %cst_40 = arith.constant 9.900000e-01 : f32
    %41 = vector.broadcast %cst_40 : f32 to vector<196x64xf32>
    %42 = arith.mulf %40, %41 : vector<196x64xf32>
    %c0_41 = arith.constant 0 : index
    %c0_42 = arith.constant 0 : index
    %43 = vector.load %arg5[%c0_41, %c0_42] : memref<196x64xf32, #tpu.memory_space<vmem>>, vector<196x64xf32>
    %cst_43 = arith.constant 0.00999999977 : f32
    %44 = vector.broadcast %cst_43 : f32 to vector<196x64xf32>
    %45 = arith.mulf %43, %44 : vector<196x64xf32>
    %46 = arith.addf %42, %45 : vector<196x64xf32>
    %c0_44 = arith.constant 0 : index
    %c0_45 = arith.constant 0 : index
    %47 = vector.load %arg25[%c0_44, %c0_45] : memref<196x64xf32, #tpu.memory_space<vmem>>, vector<196x64xf32>
    tpu.vector_store %arg25[%c0_44, %c0_45], %46 {strides = array<i32>} : memref<196x64xf32, #tpu.memory_space<vmem>>, vector<196x64xf32>,
    %c0_46 = arith.constant 0 : index
    %c0_47 = arith.constant 0 : index
    %48 = vector.load %arg16[%c0_46, %c0_47] : memref<64x256xf32, #tpu.memory_space<vmem>>, vector<64x256xf32>
    %cst_48 = arith.constant 9.900000e-01 : f32
    %49 = vector.broadcast %cst_48 : f32 to vector<64x256xf32>
    %50 = arith.mulf %48, %49 : vector<64x256xf32>
    %c0_49 = arith.constant 0 : index
    %c0_50 = arith.constant 0 : index
    %51 = vector.load %arg6[%c0_49, %c0_50] : memref<64x256xf32, #tpu.memory_space<vmem>>, vector<64x256xf32>
    %cst_51 = arith.constant 0.00999999977 : f32
    %52 = vector.broadcast %cst_51 : f32 to vector<64x256xf32>
    %53 = arith.mulf %51, %52 : vector<64x256xf32>
    %54 = arith.addf %50, %53 : vector<64x256xf32>
    %c0_52 = arith.constant 0 : index
    %c0_53 = arith.constant 0 : index
    %55 = vector.load %arg26[%c0_52, %c0_53] : memref<64x256xf32, #tpu.memory_space<vmem>>, vector<64x256xf32>
    tpu.vector_store %arg26[%c0_52, %c0_53], %54 {strides = array<i32>} : memref<64x256xf32, #tpu.memory_space<vmem>>, vector<64x256xf32>,
    %c0_54 = arith.constant 0 : index
    %c0_55 = arith.constant 0 : index
    %56 = vector.load %arg17[%c0_54, %c0_55] : memref<1x256xf32, #tpu.memory_space<vmem>>, vector<1x256xf32>
    %cst_56 = arith.constant 9.900000e-01 : f32
    %57 = vector.broadcast %cst_56 : f32 to vector<1x256xf32>
    %58 = arith.mulf %56, %57 : vector<1x256xf32>
    %c0_57 = arith.constant 0 : index
    %c0_58 = arith.constant 0 : index
    %59 = vector.load %arg7[%c0_57, %c0_58] : memref<1x256xf32, #tpu.memory_space<vmem>>, vector<1x256xf32>
    %cst_59 = arith.constant 0.00999999977 : f32
    %60 = vector.broadcast %cst_59 : f32 to vector<1x256xf32>
    %61 = arith.mulf %59, %60 : vector<1x256xf32>
    %62 = arith.addf %58, %61 : vector<1x256xf32>
    %c0_60 = arith.constant 0 : index
    %c0_61 = arith.constant 0 : index
    %63 = vector.load %arg27[%c0_60, %c0_61] : memref<1x256xf32, #tpu.memory_space<vmem>>, vector<1x256xf32>
    tpu.vector_store %arg27[%c0_60, %c0_61], %62 {strides = array<i32>} : memref<1x256xf32, #tpu.memory_space<vmem>>, vector<1x256xf32>,
    %c0_62 = arith.constant 0 : index
    %c0_63 = arith.constant 0 : index
    %64 = vector.load %arg18[%c0_62, %c0_63] : memref<256x128xf32, #tpu.memory_space<vmem>>, vector<256x128xf32>
    %cst_64 = arith.constant 9.900000e-01 : f32
    %65 = vector.broadcast %cst_64 : f32 to vector<256x128xf32>
    %66 = arith.mulf %64, %65 : vector<256x128xf32>
    %c0_65 = arith.constant 0 : index
    %c0_66 = arith.constant 0 : index
    %67 = vector.load %arg8[%c0_65, %c0_66] : memref<256x128xf32, #tpu.memory_space<vmem>>, vector<256x128xf32>
    %cst_67 = arith.constant 0.00999999977 : f32
    %68 = vector.broadcast %cst_67 : f32 to vector<256x128xf32>
    %69 = arith.mulf %67, %68 : vector<256x128xf32>
    %70 = arith.addf %66, %69 : vector<256x128xf32>
    %c0_68 = arith.constant 0 : index
    %c0_69 = arith.constant 0 : index
    %71 = vector.load %arg28[%c0_68, %c0_69] : memref<256x128xf32, #tpu.memory_space<vmem>>, vector<256x128xf32>
    tpu.vector_store %arg28[%c0_68, %c0_69], %70 {strides = array<i32>} : memref<256x128xf32, #tpu.memory_space<vmem>>, vector<256x128xf32>,
    %c0_70 = arith.constant 0 : index
    %c0_71 = arith.constant 0 : index
    %72 = vector.load %arg19[%c0_70, %c0_71] : memref<1x128xf32, #tpu.memory_space<vmem>>, vector<1x128xf32>
    %cst_72 = arith.constant 9.900000e-01 : f32
    %73 = vector.broadcast %cst_72 : f32 to vector<1x128xf32>
    %74 = arith.mulf %72, %73 : vector<1x128xf32>
    %c0_73 = arith.constant 0 : index
    %c0_74 = arith.constant 0 : index
    %75 = vector.load %arg9[%c0_73, %c0_74] : memref<1x128xf32, #tpu.memory_space<vmem>>, vector<1x128xf32>
    %cst_75 = arith.constant 0.00999999977 : f32
    %76 = vector.broadcast %cst_75 : f32 to vector<1x128xf32>
    %77 = arith.mulf %75, %76 : vector<1x128xf32>
    %78 = arith.addf %74, %77 : vector<1x128xf32>
    %c0_76 = arith.constant 0 : index
    %c0_77 = arith.constant 0 : index
    %79 = vector.load %arg29[%c0_76, %c0_77] : memref<1x128xf32, #tpu.memory_space<vmem>>, vector<1x128xf32>
    tpu.vector_store %arg29[%c0_76, %c0_77], %78 {strides = array<i32>} : memref<1x128xf32, #tpu.memory_space<vmem>>, vector<1x128xf32>,
    return
  }
}

</mosaic_0001>

<llo_original>
// kernel: tpu_custom_call.1
$region0: #{tpu_custom_call.1}
  #allocation0 [shape = 'u32[]', space=smem, size = 0x4, offset = 0x4, fixed_abs, tag = 'smem constant byte address 0x4 - core index']
  #allocation1 [shape = 'u32[144,128]{1,0:T(1,128)}', space=vmem, size = 0x12000, scoped, tag = 'internal scratch']
  %s0 = inlined_call_operand.smem [shape: u32[30], index: -1, kind: input, shape index: {}]
  %s1 = sld [smem:[%s0]]
  %s2 = scalar_lea.smem %s0, 1
  %s3 = sld [smem:[%s2]]
  %s4 = scalar_lea.smem %s0, 2
  %s5 = sld [smem:[%s4]]
  %s6 = scalar_lea.smem %s0, 3
  %s7 = sld [smem:[%s6]]
  %s8 = scalar_lea.smem %s0, 4
  %s9 = sld [smem:[%s8]]
  %s10 = scalar_lea.smem %s0, 5
  %s11 = sld [smem:[%s10]]
  %s12 = scalar_lea.smem %s0, 6
  %s13 = sld [smem:[%s12]]
  %s14 = scalar_lea.smem %s0, 7
  %s15 = sld [smem:[%s14]]
  %s16 = scalar_lea.smem %s0, 8
  %s17 = sld [smem:[%s16]]
  %s18 = scalar_lea.smem %s0, 9
  %s19 = sld [smem:[%s18]]
  %s20 = scalar_lea.smem %s0, 10
  %s21 = sld [smem:[%s20]]
  %s22 = scalar_lea.smem %s0, 11
  %s23 = sld [smem:[%s22]]
  %s24 = scalar_lea.smem %s0, 12
  %s25 = sld [smem:[%s24]]
  %s26 = scalar_lea.smem %s0, 13
  %s27 = sld [smem:[%s26]]
  %s28 = scalar_lea.smem %s0, 14
  %s29 = sld [smem:[%s28]]
  %s30 = scalar_lea.smem %s0, 15
  %s31 = sld [smem:[%s30]]
  %s32 = scalar_lea.smem %s0, 16
  %s33 = sld [smem:[%s32]]
  %s34 = scalar_lea.smem %s0, 17
  %s35 = sld [smem:[%s34]]
  %s36 = scalar_lea.smem %s0, 18
  %s37 = sld [smem:[%s36]]
  %s38 = scalar_lea.smem %s0, 19
  %s39 = sld [smem:[%s38]]
  %s40 = scalar_lea.smem %s0, 20
  %s41 = sld [smem:[%s40]]
  %s42 = scalar_lea.smem %s0, 21
  %s43 = sld [smem:[%s42]]
  %s44 = scalar_lea.smem %s0, 22
  %s45 = sld [smem:[%s44]]
  %s46 = scalar_lea.smem %s0, 23
  %s47 = sld [smem:[%s46]]
  %s48 = scalar_lea.smem %s0, 24
  %s49 = sld [smem:[%s48]]
  %s50 = scalar_lea.smem %s0, 25
  %s51 = sld [smem:[%s50]]
  %s52 = scalar_lea.smem %s0, 26
  %s53 = sld [smem:[%s52]]
  %s54 = scalar_lea.smem %s0, 27
  %s55 = sld [smem:[%s54]]
  %s56 = scalar_lea.smem %s0, 28
  %s57 = sld [smem:[%s56]]
  %s58 = scalar_lea.smem %s0, 29
  %s59 = sld [smem:[%s58]]
  %60 = xla_tuple %s41, %s43, %s45, %s47, %s49, %s51, %s53, %s55, %s57, %s59
  %s61 = sld [smem:[#allocation0]]
  $region162: #{tpu_custom_call.1} parent=0
    _
  %s63 = ssub.s32 1, %s61
  %s64 = scalar_select 0, %s63, %s61
  // Predicated region
  $region2: #{tpu_custom_call.1} parent=0 // pred_check
    _
  $region3: #{tpu_custom_call.1} parent=0 // pred_check_branch
    %66 = sbr.rel (0) target = $region5
  $region4: #{tpu_custom_call.1} parent=0 // pred_region
    _
  $region5: #{tpu_custom_call.1} parent=0 // pred_fallthru
    _
  // Predicated region
  $region6: #{tpu_custom_call.1} parent=0 // pred_check
    _
  $region7: #{tpu_custom_call.1} parent=0 // pred_check_branch
    %68 = sbr.rel (0) target = $region9
  $region8: #{tpu_custom_call.1} parent=0 // pred_region
    _
  $region9: #{tpu_custom_call.1} parent=0 // pred_fallthru
    _
  // Predicated region
  $region10: #{tpu_custom_call.1} parent=0 // pred_check
    _
  $region11: #{tpu_custom_call.1} parent=0 // pred_check_branch
    %70 = sbr.rel (0) target = $region13
  $region12: #{tpu_custom_call.1} parent=0 // pred_region
    _
  $region13: #{tpu_custom_call.1} parent=0 // pred_fallthru
    _
  // Predicated region
  $region14: #{tpu_custom_call.1} parent=0 // pred_check
    _
  $region15: #{tpu_custom_call.1} parent=0 // pred_check_branch
    %72 = sbr.rel (0) target = $region17
  $region16: #{tpu_custom_call.1} parent=0 // pred_region
    _
  $region17: #{tpu_custom_call.1} parent=0 // pred_fallthru
    _
  // Predicated region
  $region18: #{tpu_custom_call.1} parent=0 // pred_check
    _
  $region19: #{tpu_custom_call.1} parent=0 // pred_check_branch
    %74 = sbr.rel (0) target = $region21
  $region20: #{tpu_custom_call.1} parent=0 // pred_region
    _
  $region21: #{tpu_custom_call.1} parent=0 // pred_fallthru
    _
  // Predicated region
  $region22: #{tpu_custom_call.1} parent=0 // pred_check
    _
  $region23: #{tpu_custom_call.1} parent=0 // pred_check_branch
    %76 = sbr.rel (0) target = $region25
  $region24: #{tpu_custom_call.1} parent=0 // pred_region
    _
  $region25: #{tpu_custom_call.1} parent=0 // pred_fallthru
    _
  // Predicated region
  $region26: #{tpu_custom_call.1} parent=0 // pred_check
    _
  $region27: #{tpu_custom_call.1} parent=0 // pred_check_branch
    %78 = sbr.rel (0) target = $region29
  $region28: #{tpu_custom_call.1} parent=0 // pred_region
    _
  $region29: #{tpu_custom_call.1} parent=0 // pred_fallthru
    _
  // Predicated region
  $region30: #{tpu_custom_call.1} parent=0 // pred_check
    _
  $region31: #{tpu_custom_call.1} parent=0 // pred_check_branch
    %80 = sbr.rel (0) target = $region33
  $region32: #{tpu_custom_call.1} parent=0 // pred_region
    _
  $region33: #{tpu_custom_call.1} parent=0 // pred_fallthru
    _
  // Predicated region
  $region34: #{tpu_custom_call.1} parent=0 // pred_check
    _
  $region35: #{tpu_custom_call.1} parent=0 // pred_check_branch
    %82 = sbr.rel (0) target = $region37
  $region36: #{tpu_custom_call.1} parent=0 // pred_region
    _
  $region37: #{tpu_custom_call.1} parent=0 // pred_fallthru
    _
  // Predicated region
  $region38: #{tpu_custom_call.1} parent=0 // pred_check
    _
  $region39: #{tpu_custom_call.1} parent=0 // pred_check_branch
    %84 = sbr.rel (0) target = $region41
  $region40: #{tpu_custom_call.1} parent=0 // pred_region
    _
  $region41: #{tpu_custom_call.1} parent=0 // pred_fallthru
    _
  // Predicated region
  $region42: #{tpu_custom_call.1} parent=0 // pred_check
    _
  $region43: #{tpu_custom_call.1} parent=0 // pred_check_branch
    %86 = sbr.rel (0) target = $region45
  $region44: #{tpu_custom_call.1} parent=0 // pred_region
    _
  $region45: #{tpu_custom_call.1} parent=0 // pred_fallthru
    _
  // Predicated region
  $region46: #{tpu_custom_call.1} parent=0 // pred_check
    _
  $region47: #{tpu_custom_call.1} parent=0 // pred_check_branch
    %88 = sbr.rel (0) target = $region49
  $region48: #{tpu_custom_call.1} parent=0 // pred_region
    _
  $region49: #{tpu_custom_call.1} parent=0 // pred_fallthru
    _
  // Predicated region
  $region50: #{tpu_custom_call.1} parent=0 // pred_check
    _
  $region51: #{tpu_custom_call.1} parent=0 // pred_check_branch
    %90 = sbr.rel (0) target = $region53
  $region52: #{tpu_custom_call.1} parent=0 // pred_region
    _
  $region53: #{tpu_custom_call.1} parent=0 // pred_fallthru
    _
  // Predicated region
  $region54: #{tpu_custom_call.1} parent=0 // pred_check
    _
  $region55: #{tpu_custom_call.1} parent=0 // pred_check_branch
    %92 = sbr.rel (0) target = $region57
  $region56: #{tpu_custom_call.1} parent=0 // pred_region
    _
  $region57: #{tpu_custom_call.1} parent=0 // pred_fallthru
    _
  // Predicated region
  $region58: #{tpu_custom_call.1} parent=0 // pred_check
    _
  $region59: #{tpu_custom_call.1} parent=0 // pred_check_branch
    %94 = sbr.rel (0) target = $region61
  $region60: #{tpu_custom_call.1} parent=0 // pred_region
    _
  $region61: #{tpu_custom_call.1} parent=0 // pred_fallthru
    _
  // Predicated region
  $region62: #{tpu_custom_call.1} parent=0 // pred_check
    _
  $region63: #{tpu_custom_call.1} parent=0 // pred_check_branch
    %96 = sbr.rel (0) target = $region65
  $region64: #{tpu_custom_call.1} parent=0 // pred_region
    _
  $region65: #{tpu_custom_call.1} parent=0 // pred_fallthru
    _
  // Predicated region
  $region66: #{tpu_custom_call.1} parent=0 // pred_check
    _
  $region67: #{tpu_custom_call.1} parent=0 // pred_check_branch
    %98 = sbr.rel (0) target = $region69
  $region68: #{tpu_custom_call.1} parent=0 // pred_region
    _
  $region69: #{tpu_custom_call.1} parent=0 // pred_fallthru
    _
  // Predicated region
  $region70: #{tpu_custom_call.1} parent=0 // pred_check
    _
  $region71: #{tpu_custom_call.1} parent=0 // pred_check_branch
    %100 = sbr.rel (0) target = $region73
  $region72: #{tpu_custom_call.1} parent=0 // pred_region
    _
  $region73: #{tpu_custom_call.1} parent=0 // pred_fallthru
    _
  // Predicated region
  $region74: #{tpu_custom_call.1} parent=0 // pred_check
    _
  $region75: #{tpu_custom_call.1} parent=0 // pred_check_branch
    %102 = sbr.rel (0) target = $region77
  $region76: #{tpu_custom_call.1} parent=0 // pred_region
    _
  $region77: #{tpu_custom_call.1} parent=0 // pred_fallthru
    _
  // Predicated region
  $region78: #{tpu_custom_call.1} parent=0 // pred_check
    _
  $region79: #{tpu_custom_call.1} parent=0 // pred_check_branch
    %104 = sbr.rel (0) target = $region81
  $region80: #{tpu_custom_call.1} parent=0 // pred_region
    _
  $region81: #{tpu_custom_call.1} parent=0 // pred_fallthru
    _
  %v105 = vld [vmem:[%s21] sm:$0xff]
  %v106 = vld [vmem:[%s21 + $0x8] sm:$0xff]
  %v107 = vld [vmem:[%s21 + $0x10] sm:$0xff]
  %v108 = vld [vmem:[%s21 + $0x18] sm:$0xff]
  %v109 = vld [vmem:[%s21 + $0x20] sm:$0xff]
  %v110 = vld [vmem:[%s21 + $0x28] sm:$0xff]
  %v111 = vld [vmem:[%s21 + $0x30] sm:$0xff]
  %v112 = vld [vmem:[%s21 + $0x38] sm:$0xff]
  %v113 = vld [vmem:[%s21 + $0x40] sm:$0xff]
  %v114 = vld [vmem:[%s21 + $0x48] sm:$0xff]
  %v115 = vld [vmem:[%s21 + $0x50] sm:$0xff]
  %v116 = vld [vmem:[%s21 + $0x58] sm:$0xff]
  %v117 = vld [vmem:[%s21 + $0x60] sm:$0xff]
  %v118 = vld [vmem:[%s21 + $0x68] sm:$0xff]
  %v119 = vld [vmem:[%s21 + $0x70] sm:$0xff]
  %v120 = vld [vmem:[%s21 + $0x78] sm:$0xff]
  %v121 = vld [vmem:[%s21 + $0x80] sm:$0xff]
  %v122 = vld [vmem:[%s21 + $0x88] sm:$0xff]
  %v123 = vld [vmem:[%s21 + $0x90] sm:$0x7]
  %v124 = vmul.f32 %v105, 0.99
  %v125 = vmul.f32 %v106, 0.99
  %v126 = vmul.f32 %v107, 0.99
  %v127 = vmul.f32 %v108, 0.99
  %v128 = vmul.f32 %v109, 0.99
  %v129 = vmul.f32 %v110, 0.99
  %v130 = vmul.f32 %v111, 0.99
  %v131 = vmul.f32 %v112, 0.99
  %v132 = vmul.f32 %v113, 0.99
  %v133 = vmul.f32 %v114, 0.99
  %v134 = vmul.f32 %v115, 0.99
  %v135 = vmul.f32 %v116, 0.99
  %v136 = vmul.f32 %v117, 0.99
  %v137 = vmul.f32 %v118, 0.99
  %v138 = vmul.f32 %v119, 0.99
  %v139 = vmul.f32 %v120, 0.99
  %v140 = vmul.f32 %v121, 0.99
  %v141 = vmul.f32 %v122, 0.99
  %v142 = vmul.f32 %v123, 0.99
  %v143 = vld [vmem:[%s1] sm:$0xff]
  %v144 = vld [vmem:[%s1 + $0x8] sm:$0xff]
  %v145 = vld [vmem:[%s1 + $0x10] sm:$0xff]
  %v146 = vld [vmem:[%s1 + $0x18] sm:$0xff]
  %v147 = vld [vmem:[%s1 + $0x20] sm:$0xff]
  %v148 = vld [vmem:[%s1 + $0x28] sm:$0xff]
  %v149 = vld [vmem:[%s1 + $0x30] sm:$0xff]
  %v150 = vld [vmem:[%s1 + $0x38] sm:$0xff]
  %v151 = vld [vmem:[%s1 + $0x40] sm:$0xff]
  %v152 = vld [vmem:[%s1 + $0x48] sm:$0xff]
  %v153 = vld [vmem:[%s1 + $0x50] sm:$0xff]
  %v154 = vld [vmem:[%s1 + $0x58] sm:$0xff]
  %v155 = vld [vmem:[%s1 + $0x60] sm:$0xff]
  %v156 = vld [vmem:[%s1 + $0x68] sm:$0xff]
  %v157 = vld [vmem:[%s1 + $0x70] sm:$0xff]
  %v158 = vld [vmem:[%s1 + $0x78] sm:$0xff]
  %v159 = vld [vmem:[%s1 + $0x80] sm:$0xff]
  %v160 = vld [vmem:[%s1 + $0x88] sm:$0xff]
  %v161 = vld [vmem:[%s1 + $0x90] sm:$0x7]
  %v162 = vmul.f32 %v143, 0.01
  %v163 = vmul.f32 %v144, 0.01
  %v164 = vmul.f32 %v145, 0.01
  %v165 = vmul.f32 %v146, 0.01
  %v166 = vmul.f32 %v147, 0.01
  %v167 = vmul.f32 %v148, 0.01
  %v168 = vmul.f32 %v149, 0.01
  %v169 = vmul.f32 %v150, 0.01
  %v170 = vmul.f32 %v151, 0.01
  %v171 = vmul.f32 %v152, 0.01
  %v172 = vmul.f32 %v153, 0.01
  %v173 = vmul.f32 %v154, 0.01
  %v174 = vmul.f32 %v155, 0.01
  %v175 = vmul.f32 %v156, 0.01
  %v176 = vmul.f32 %v157, 0.01
  %v177 = vmul.f32 %v158, 0.01
  %v178 = vmul.f32 %v159, 0.01
  %v179 = vmul.f32 %v160, 0.01
  %v180 = vmul.f32 %v161, 0.01
  %v181 = vadd.f32 %v124, %v162
  %v182 = vadd.f32 %v125, %v163
  %v183 = vadd.f32 %v126, %v164
  %v184 = vadd.f32 %v127, %v165
  %v185 = vadd.f32 %v128, %v166
  %v186 = vadd.f32 %v129, %v167
  %v187 = vadd.f32 %v130, %v168
  %v188 = vadd.f32 %v131, %v169
  %v189 = vadd.f32 %v132, %v170
  %v190 = vadd.f32 %v133, %v171
  %v191 = vadd.f32 %v134, %v172
  %v192 = vadd.f32 %v135, %v173
  %v193 = vadd.f32 %v136, %v174
  %v194 = vadd.f32 %v137, %v175
  %v195 = vadd.f32 %v138, %v176
  %v196 = vadd.f32 %v139, %v177
  %v197 = vadd.f32 %v140, %v178
  %v198 = vadd.f32 %v141, %v179
  %v199 = vadd.f32 %v142, %v180
  %vm200 = vcmask 523264
  %201 = vst.msk [vmem:[%s41] sm:$0xff] %vm200, %v181
  %202 = vst.msk [vmem:[%s41 + $0x8] sm:$0xff] %vm200, %v182
  %203 = vst.msk [vmem:[%s41 + $0x10] sm:$0xff] %vm200, %v183
  %204 = vst.msk [vmem:[%s41 + $0x18] sm:$0xff] %vm200, %v184
  %205 = vst.msk [vmem:[%s41 + $0x20] sm:$0xff] %vm200, %v185
  %206 = vst.msk [vmem:[%s41 + $0x28] sm:$0xff] %vm200, %v186
  %207 = vst.msk [vmem:[%s41 + $0x30] sm:$0xff] %vm200, %v187
  %208 = vst.msk [vmem:[%s41 + $0x38] sm:$0xff] %vm200, %v188
  %209 = vst.msk [vmem:[%s41 + $0x40] sm:$0xff] %vm200, %v189
  %210 = vst.msk [vmem:[%s41 + $0x48] sm:$0xff] %vm200, %v190
  %211 = vst.msk [vmem:[%s41 + $0x50] sm:$0xff] %vm200, %v191
  %212 = vst.msk [vmem:[%s41 + $0x58] sm:$0xff] %vm200, %v192
  %213 = vst.msk [vmem:[%s41 + $0x60] sm:$0xff] %vm200, %v193
  %214 = vst.msk [vmem:[%s41 + $0x68] sm:$0xff] %vm200, %v194
  %215 = vst.msk [vmem:[%s41 + $0x70] sm:$0xff] %vm200, %v195
  %216 = vst.msk [vmem:[%s41 + $0x78] sm:$0xff] %vm200, %v196
  %217 = vst.msk [vmem:[%s41 + $0x80] sm:$0xff] %vm200, %v197
  %218 = vst.msk [vmem:[%s41 + $0x88] sm:$0xff] %vm200, %v198
  %vm219 = vcmask 518144
  %220 = vst.msk [vmem:[%s41 + $0x90] sm:$0x7] %vm219, %v199
  %v221 = vld [vmem:[%s23] sm:$0xff]
  %v222 = vld [vmem:[%s23 + $0x8] sm:$0xff]
  %v223 = vld [vmem:[%s23 + $0x10] sm:$0xff]
  %v224 = vld [vmem:[%s23 + $0x18] sm:$0xff]
  %v225 = vld [vmem:[%s23 + $0x20] sm:$0xff]
  %v226 = vld [vmem:[%s23 + $0x28] sm:$0xff]
  %v227 = vld [vmem:[%s23 + $0x30] sm:$0xff]
  %v228 = vld [vmem:[%s23 + $0x38] sm:$0xff]
  %v229 = vld [vmem:[%s23 + $0x40] sm:$0xff]
  %v230 = vld [vmem:[%s23 + $0x48] sm:$0xff]
  %v231 = vld [vmem:[%s23 + $0x50] sm:$0xff]
  %v232 = vld [vmem:[%s23 + $0x58] sm:$0xff]
  %v233 = vld [vmem:[%s23 + $0x60] sm:$0xff]
  %v234 = vld [vmem:[%s23 + $0x68] sm:$0xff]
  %v235 = vld [vmem:[%s23 + $0x70] sm:$0xff]
  %v236 = vld [vmem:[%s23 + $0x78] sm:$0xff]
  %v237 = vmul.f32 %v221, 0.99
  %v238 = vmul.f32 %v222, 0.99
  %v239 = vmul.f32 %v223, 0.99
  %v240 = vmul.f32 %v224, 0.99
  %v241 = vmul.f32 %v225, 0.99
  %v242 = vmul.f32 %v226, 0.99
  %v243 = vmul.f32 %v227, 0.99
  %v244 = vmul.f32 %v228, 0.99
  %v245 = vmul.f32 %v229, 0.99
  %v246 = vmul.f32 %v230, 0.99
  %v247 = vmul.f32 %v231, 0.99
  %v248 = vmul.f32 %v232, 0.99
  %v249 = vmul.f32 %v233, 0.99
  %v250 = vmul.f32 %v234, 0.99
  %v251 = vmul.f32 %v235, 0.99
  %v252 = vmul.f32 %v236, 0.99
  %v253 = vld [vmem:[%s3] sm:$0xff]
  %v254 = vld [vmem:[%s3 + $0x8] sm:$0xff]
  %v255 = vld [vmem:[%s3 + $0x10] sm:$0xff]
  %v256 = vld [vmem:[%s3 + $0x18] sm:$0xff]
  %v257 = vld [vmem:[%s3 + $0x20] sm:$0xff]
  %v258 = vld [vmem:[%s3 + $0x28] sm:$0xff]
  %v259 = vld [vmem:[%s3 + $0x30] sm:$0xff]
  %v260 = vld [vmem:[%s3 + $0x38] sm:$0xff]
  %v261 = vld [vmem:[%s3 + $0x40] sm:$0xff]
  %v262 = vld [vmem:[%s3 + $0x48] sm:$0xff]
  %v263 = vld [vmem:[%s3 + $0x50] sm:$0xff]
  %v264 = vld [vmem:[%s3 + $0x58] sm:$0xff]
  %v265 = vld [vmem:[%s3 + $0x60] sm:$0xff]
  %v266 = vld [vmem:[%s3 + $0x68] sm:$0xff]
  %v267 = vld [vmem:[%s3 + $0x70] sm:$0xff]
  %v268 = vld [vmem:[%s3 + $0x78] sm:$0xff]
  %v269 = vmul.f32 %v253, 0.01
  %v270 = vmul.f32 %v254, 0.01
  %v271 = vmul.f32 %v255, 0.01
  %v272 = vmul.f32 %v256, 0.01
  %v273 = vmul.f32 %v257, 0.01
  %v274 = vmul.f32 %v258, 0.01
  %v275 = vmul.f32 %v259, 0.01
  %v276 = vmul.f32 %v260, 0.01
  %v277 = vmul.f32 %v261, 0.01
  %v278 = vmul.f32 %v262, 0.01
  %v279 = vmul.f32 %v263, 0.01
  %v280 = vmul.f32 %v264, 0.01
  %v281 = vmul.f32 %v265, 0.01
  %v282 = vmul.f32 %v266, 0.01
  %v283 = vmul.f32 %v267, 0.01
  %v284 = vmul.f32 %v268, 0.01
  %v285 = vadd.f32 %v237, %v269
  %v286 = vadd.f32 %v238, %v270
  %v287 = vadd.f32 %v239, %v271
  %v288 = vadd.f32 %v240, %v272
  %v289 = vadd.f32 %v241, %v273
  %v290 = vadd.f32 %v242, %v274
  %v291 = vadd.f32 %v243, %v275
  %v292 = vadd.f32 %v244, %v276
  %v293 = vadd.f32 %v245, %v277
  %v294 = vadd.f32 %v246, %v278
  %v295 = vadd.f32 %v247, %v279
  %v296 = vadd.f32 %v248, %v280
  %v297 = vadd.f32 %v249, %v281
  %v298 = vadd.f32 %v250, %v282
  %v299 = vadd.f32 %v251, %v283
  %v300 = vadd.f32 %v252, %v284
  %301 = vst [vmem:[%s43] sm:$0xff] %v285
  %302 = vst [vmem:[%s43 + $0x8] sm:$0xff] %v286
  %303 = vst [vmem:[%s43 + $0x10] sm:$0xff] %v287
  %304 = vst [vmem:[%s43 + $0x18] sm:$0xff] %v288
  %305 = vst [vmem:[%s43 + $0x20] sm:$0xff] %v289
  %306 = vst [vmem:[%s43 + $0x28] sm:$0xff] %v290
  %307 = vst [vmem:[%s43 + $0x30] sm:$0xff] %v291
  %308 = vst [vmem:[%s43 + $0x38] sm:$0xff] %v292
  %309 = vst [vmem:[%s43 + $0x40] sm:$0xff] %v293
  %310 = vst [vmem:[%s43 + $0x48] sm:$0xff] %v294
  %311 = vst [vmem:[%s43 + $0x50] sm:$0xff] %v295
  %312 = vst [vmem:[%s43 + $0x58] sm:$0xff] %v296
  %313 = vst [vmem:[%s43 + $0x60] sm:$0xff] %v297
  %314 = vst [vmem:[%s43 + $0x68] sm:$0xff] %v298
  %315 = vst [vmem:[%s43 + $0x70] sm:$0xff] %v299
  %316 = vst [vmem:[%s43 + $0x78] sm:$0xff] %v300
  %v317 = vld [vmem:[%s25] sm:$0x3]
  %v318 = vmul.f32 %v317, 0.99
  %v319 = vld [vmem:[%s5] sm:$0x3]
  %v320 = vmul.f32 %v319, 0.01
  %v321 = vadd.f32 %v318, %v320
  %v322 = vlaneseq
  %vm323 = vcmp.ge.s32.totalorder %v322, 0
  %vm324 = vcmp.lt.s32.totalorder %v322, 256
  %vm325 = vmand %vm323, %vm324
  %326 = vst.msk [vmem:[%s45] sm:$0x3] %vm325, %v321
  %v327 = vld [vmem:[%s27] sm:$0xff]
  %v328 = vld [vmem:[%s27 + $0x8] sm:$0xff]
  %v329 = vld [vmem:[%s27 + $0x10] sm:$0xff]
  %v330 = vld [vmem:[%s27 + $0x18] sm:$0xff]
  %v331 = vld [vmem:[%s27 + $0x20] sm:$0xff]
  %v332 = vld [vmem:[%s27 + $0x28] sm:$0xff]
  %v333 = vld [vmem:[%s27 + $0x30] sm:$0xff]
  %v334 = vld [vmem:[%s27 + $0x38] sm:$0xff]
  %v335 = vld [vmem:[%s27 + $0x40] sm:$0xff]
  %v336 = vld [vmem:[%s27 + $0x48] sm:$0xff]
  %v337 = vld [vmem:[%s27 + $0x50] sm:$0xff]
  %v338 = vld [vmem:[%s27 + $0x58] sm:$0xff]
  %v339 = vld [vmem:[%s27 + $0x60] sm:$0xff]
  %v340 = vld [vmem:[%s27 + $0x68] sm:$0xff]
  %v341 = vld [vmem:[%s27 + $0x70] sm:$0xff]
  %v342 = vld [vmem:[%s27 + $0x78] sm:$0xff]
  %v343 = vld [vmem:[%s27 + $0x80] sm:$0xff]
  %v344 = vld [vmem:[%s27 + $0x88] sm:$0xff]
  %v345 = vld [vmem:[%s27 + $0x90] sm:$0xff]
  %v346 = vld [vmem:[%s27 + $0x98] sm:$0xff]
  %v347 = vld [vmem:[%s27 + $0xa0] sm:$0xff]
  %v348 = vld [vmem:[%s27 + $0xa8] sm:$0xff]
  %v349 = vld [vmem:[%s27 + $0xb0] sm:$0xff]
  %v350 = vld [vmem:[%s27 + $0xb8] sm:$0xff]
  %v351 = vld [vmem:[%s27 + $0xc0] sm:$0xff]
  %v352 = vld [vmem:[%s27 + $0xc8] sm:$0xff]
  %v353 = vld [vmem:[%s27 + $0xd0] sm:$0xff]
  %v354 = vld [vmem:[%s27 + $0xd8] sm:$0xff]
  %v355 = vld [vmem:[%s27 + $0xe0] sm:$0xff]
  %v356 = vld [vmem:[%s27 + $0xe8] sm:$0xff]
  %v357 = vld [vmem:[%s27 + $0xf0] sm:$0xff]
  %v358 = vld [vmem:[%s27 + $0xf8] sm:$0xff]
  %v359 = vmul.f32 %v327, 0.99
  %v360 = vmul.f32 %v328, 0.99
  %v361 = vmul.f32 %v329, 0.99
  %v362 = vmul.f32 %v330, 0.99
  %v363 = vmul.f32 %v331, 0.99
  %v364 = vmul.f32 %v332, 0.99
  %v365 = vmul.f32 %v333, 0.99
  %v366 = vmul.f32 %v334, 0.99
  %v367 = vmul.f32 %v335, 0.99
  %v368 = vmul.f32 %v336, 0.99
  %v369 = vmul.f32 %v337, 0.99
  %v370 = vmul.f32 %v338, 0.99
  %v371 = vmul.f32 %v339, 0.99
  %v372 = vmul.f32 %v340, 0.99
  %v373 = vmul.f32 %v341, 0.99
  %v374 = vmul.f32 %v342, 0.99
  %v375 = vmul.f32 %v343, 0.99
  %v376 = vmul.f32 %v344, 0.99
  %v377 = vmul.f32 %v345, 0.99
  %v378 = vmul.f32 %v346, 0.99
  %v379 = vmul.f32 %v347, 0.99
  %v380 = vmul.f32 %v348, 0.99
  %v381 = vmul.f32 %v349, 0.99
  %v382 = vmul.f32 %v350, 0.99
  %v383 = vmul.f32 %v351, 0.99
  %v384 = vmul.f32 %v352, 0.99
  %v385 = vmul.f32 %v353, 0.99
  %v386 = vmul.f32 %v354, 0.99
  %v387 = vmul.f32 %v355, 0.99
  %v388 = vmul.f32 %v356, 0.99
  %v389 = vmul.f32 %v357, 0.99
  %v390 = vmul.f32 %v358, 0.99
  %v391 = vld [vmem:[%s7] sm:$0xff]
  %v392 = vld [vmem:[%s7 + $0x8] sm:$0xff]
  %v393 = vld [vmem:[%s7 + $0x10] sm:$0xff]
  %v394 = vld [vmem:[%s7 + $0x18] sm:$0xff]
  %v395 = vld [vmem:[%s7 + $0x20] sm:$0xff]
  %v396 = vld [vmem:[%s7 + $0x28] sm:$0xff]
  %v397 = vld [vmem:[%s7 + $0x30] sm:$0xff]
  %v398 = vld [vmem:[%s7 + $0x38] sm:$0xff]
  %v399 = vld [vmem:[%s7 + $0x40] sm:$0xff]
  %v400 = vld [vmem:[%s7 + $0x48] sm:$0xff]
  %v401 = vld [vmem:[%s7 + $0x50] sm:$0xff]
  %v402 = vld [vmem:[%s7 + $0x58] sm:$0xff]
  %v403 = vld [vmem:[%s7 + $0x60] sm:$0xff]
  %v404 = vld [vmem:[%s7 + $0x68] sm:$0xff]
  %v405 = vld [vmem:[%s7 + $0x70] sm:$0xff]
  %v406 = vld [vmem:[%s7 + $0x78] sm:$0xff]
  %v407 = vld [vmem:[%s7 + $0x80] sm:$0xff]
  %v408 = vld [vmem:[%s7 + $0x88] sm:$0xff]
  %v409 = vld [vmem:[%s7 + $0x90] sm:$0xff]
  %v410 = vld [vmem:[%s7 + $0x98] sm:$0xff]
  %v411 = vld [vmem:[%s7 + $0xa0] sm:$0xff]
  %v412 = vld [vmem:[%s7 + $0xa8] sm:$0xff]
  %v413 = vld [vmem:[%s7 + $0xb0] sm:$0xff]
  %v414 = vld [vmem:[%s7 + $0xb8] sm:$0xff]
  %v415 = vld [vmem:[%s7 + $0xc0] sm:$0xff]
  %v416 = vld [vmem:[%s7 + $0xc8] sm:$0xff]
  %v417 = vld [vmem:[%s7 + $0xd0] sm:$0xff]
  %v418 = vld [vmem:[%s7 + $0xd8] sm:$0xff]
  %v419 = vld [vmem:[%s7 + $0xe0] sm:$0xff]
  %v420 = vld [vmem:[%s7 + $0xe8] sm:$0xff]
  %v421 = vld [vmem:[%s7 + $0xf0] sm:$0xff]
  %v422 = vld [vmem:[%s7 + $0xf8] sm:$0xff]
  %v423 = vmul.f32 %v391, 0.01
  %v424 = vmul.f32 %v392, 0.01
  %v425 = vmul.f32 %v393, 0.01
  %v426 = vmul.f32 %v394, 0.01
  %v427 = vmul.f32 %v395, 0.01
  %v428 = vmul.f32 %v396, 0.01
  %v429 = vmul.f32 %v397, 0.01
  %v430 = vmul.f32 %v398, 0.01
  %v431 = vmul.f32 %v399, 0.01
  %v432 = vmul.f32 %v400, 0.01
  %v433 = vmul.f32 %v401, 0.01
  %v434 = vmul.f32 %v402, 0.01
  %v435 = vmul.f32 %v403, 0.01
  %v436 = vmul.f32 %v404, 0.01
  %v437 = vmul.f32 %v405, 0.01
  %v438 = vmul.f32 %v406, 0.01
  %v439 = vmul.f32 %v407, 0.01
  %v440 = vmul.f32 %v408, 0.01
  %v441 = vmul.f32 %v409, 0.01
  %v442 = vmul.f32 %v410, 0.01
  %v443 = vmul.f32 %v411, 0.01
  %v444 = vmul.f32 %v412, 0.01
  %v445 = vmul.f32 %v413, 0.01
  %v446 = vmul.f32 %v414, 0.01
  %v447 = vmul.f32 %v415, 0.01
  %v448 = vmul.f32 %v416, 0.01
  %v449 = vmul.f32 %v417, 0.01
  %v450 = vmul.f32 %v418, 0.01
  %v451 = vmul.f32 %v419, 0.01
  %v452 = vmul.f32 %v420, 0.01
  %v453 = vmul.f32 %v421, 0.01
  %v454 = vmul.f32 %v422, 0.01
  %v455 = vadd.f32 %v359, %v423
  %v456 = vadd.f32 %v360, %v424
  %v457 = vadd.f32 %v361, %v425
  %v458 = vadd.f32 %v362, %v426
  %v459 = vadd.f32 %v363, %v427
  %v460 = vadd.f32 %v364, %v428
  %v461 = vadd.f32 %v365, %v429
  %v462 = vadd.f32 %v366, %v430
  %v463 = vadd.f32 %v367, %v431
  %v464 = vadd.f32 %v368, %v432
  %v465 = vadd.f32 %v369, %v433
  %v466 = vadd.f32 %v370, %v434
  %v467 = vadd.f32 %v371, %v435
  %v468 = vadd.f32 %v372, %v436
  %v469 = vadd.f32 %v373, %v437
  %v470 = vadd.f32 %v374, %v438
  %v471 = vadd.f32 %v375, %v439
  %v472 = vadd.f32 %v376, %v440
  %v473 = vadd.f32 %v377, %v441
  %v474 = vadd.f32 %v378, %v442
  %v475 = vadd.f32 %v379, %v443
  %v476 = vadd.f32 %v380, %v444
  %v477 = vadd.f32 %v381, %v445
  %v478 = vadd.f32 %v382, %v446
  %v479 = vadd.f32 %v383, %v447
  %v480 = vadd.f32 %v384, %v448
  %v481 = vadd.f32 %v385, %v449
  %v482 = vadd.f32 %v386, %v450
  %v483 = vadd.f32 %v387, %v451
  %v484 = vadd.f32 %v388, %v452
  %v485 = vadd.f32 %v389, %v453
  %v486 = vadd.f32 %v390, %v454
  %487 = vst [vmem:[%s47] sm:$0xff] %v455
  %488 = vst [vmem:[%s47 + $0x8] sm:$0xff] %v456
  %489 = vst [vmem:[%s47 + $0x10] sm:$0xff] %v457
  %490 = vst [vmem:[%s47 + $0x18] sm:$0xff] %v458
  %491 = vst [vmem:[%s47 + $0x20] sm:$0xff] %v459
  %492 = vst [vmem:[%s47 + $0x28] sm:$0xff] %v460
  %493 = vst [vmem:[%s47 + $0x30] sm:$0xff] %v461
  %494 = vst [vmem:[%s47 + $0x38] sm:$0xff] %v462
  %495 = vst [vmem:[%s47 + $0x40] sm:$0xff] %v463
  %496 = vst [vmem:[%s47 + $0x48] sm:$0xff] %v464
  %497 = vst [vmem:[%s47 + $0x50] sm:$0xff] %v465
  %498 = vst [vmem:[%s47 + $0x58] sm:$0xff] %v466
  %499 = vst [vmem:[%s47 + $0x60] sm:$0xff] %v467
  %500 = vst [vmem:[%s47 + $0x68] sm:$0xff] %v468
  %501 = vst [vmem:[%s47 + $0x70] sm:$0xff] %v469
  %502 = vst [vmem:[%s47 + $0x78] sm:$0xff] %v470
  %503 = vst [vmem:[%s47 + $0x80] sm:$0xff] %v471
  %504 = vst [vmem:[%s47 + $0x88] sm:$0xff] %v472
  %505 = vst [vmem:[%s47 + $0x90] sm:$0xff] %v473
  %506 = vst [vmem:[%s47 + $0x98] sm:$0xff] %v474
  %507 = vst [vmem:[%s47 + $0xa0] sm:$0xff] %v475
  %508 = vst [vmem:[%s47 + $0xa8] sm:$0xff] %v476
  %509 = vst [vmem:[%s47 + $0xb0] sm:$0xff] %v477
  %510 = vst [vmem:[%s47 + $0xb8] sm:$0xff] %v478
  %511 = vst [vmem:[%s47 + $0xc0] sm:$0xff] %v479
  %512 = vst [vmem:[%s47 + $0xc8] sm:$0xff] %v480
  %513 = vst [vmem:[%s47 + $0xd0] sm:$0xff] %v481
  %514 = vst [vmem:[%s47 + $0xd8] sm:$0xff] %v482
  %515 = vst [vmem:[%s47 + $0xe0] sm:$0xff] %v483
  %516 = vst [vmem:[%s47 + $0xe8] sm:$0xff] %v484
  %517 = vst [vmem:[%s47 + $0xf0] sm:$0xff] %v485
  %518 = vst [vmem:[%s47 + $0xf8] sm:$0xff] %v486
  %v519 = vld [vmem:[%s29] sm:$0x1]
  %v520 = vmul.f32 %v519, 0.99
  %v521 = vld [vmem:[%s9] sm:$0x1]
  %v522 = vmul.f32 %v521, 0.01
  %v523 = vadd.f32 %v520, %v522
  %524 = vst [vmem:[%s49] sm:$0x1] %v523
  %v525 = vld [vmem:[%s31] sm:$0xff]
  %v526 = vld [vmem:[%s31 + $0x8] sm:$0xff]
  %v527 = vld [vmem:[%s31 + $0x10] sm:$0xff]
  %v528 = vld [vmem:[%s31 + $0x18] sm:$0xff]
  %v529 = vld [vmem:[%s31 + $0x20] sm:$0xff]
  %v530 = vld [vmem:[%s31 + $0x28] sm:$0xff]
  %v531 = vld [vmem:[%s31 + $0x30] sm:$0xff]
  %v532 = vld [vmem:[%s31 + $0x38] sm:$0xff]
  %v533 = vld [vmem:[%s31 + $0x40] sm:$0xff]
  %v534 = vld [vmem:[%s31 + $0x48] sm:$0xff]
  %v535 = vld [vmem:[%s31 + $0x50] sm:$0xff]
  %v536 = vld [vmem:[%s31 + $0x58] sm:$0xff]
  %v537 = vld [vmem:[%s31 + $0x60] sm:$0xff]
  %v538 = vld [vmem:[%s31 + $0x68] sm:$0xff]
  %v539 = vld [vmem:[%s31 + $0x70] sm:$0xff]
  %v540 = vld [vmem:[%s31 + $0x78] sm:$0xff]
  %v541 = vld [vmem:[%s31 + $0x80] sm:$0xff]
  %v542 = vld [vmem:[%s31 + $0x88] sm:$0xff]
  %v543 = vld [vmem:[%s31 + $0x90] sm:$0xff]
  %v544 = vld [vmem:[%s31 + $0x98] sm:$0xff]
  %v545 = vld [vmem:[%s31 + $0xa0] sm:$0xff]
  %v546 = vld [vmem:[%s31 + $0xa8] sm:$0xff]
  %v547 = vld [vmem:[%s31 + $0xb0] sm:$0xff]
  %v548 = vld [vmem:[%s31 + $0xb8] sm:$0xff]
  %v549 = vld [vmem:[%s31 + $0xc0] sm:$0xf]
  %v550 = vmul.f32 %v525, 0.99
  %v551 = vmul.f32 %v526, 0.99
  %v552 = vmul.f32 %v527, 0.99
  %v553 = vmul.f32 %v528, 0.99
  %v554 = vmul.f32 %v529, 0.99
  %v555 = vmul.f32 %v530, 0.99
  %v556 = vmul.f32 %v531, 0.99
  %v557 = vmul.f32 %v532, 0.99
  %v558 = vmul.f32 %v533, 0.99
  %v559 = vmul.f32 %v534, 0.99
  %v560 = vmul.f32 %v535, 0.99
  %v561 = vmul.f32 %v536, 0.99
  %v562 = vmul.f32 %v537, 0.99
  %v563 = vmul.f32 %v538, 0.99
  %v564 = vmul.f32 %v539, 0.99
  %v565 = vmul.f32 %v540, 0.99
  %v566 = vmul.f32 %v541, 0.99
  %v567 = vmul.f32 %v542, 0.99
  %v568 = vmul.f32 %v543, 0.99
  %v569 = vmul.f32 %v544, 0.99
  %v570 = vmul.f32 %v545, 0.99
  %v571 = vmul.f32 %v546, 0.99
  %v572 = vmul.f32 %v547, 0.99
  %v573 = vmul.f32 %v548, 0.99
  %v574 = vmul.f32 %v549, 0.99
  %v575 = vld [vmem:[%s11] sm:$0xff]
  %v576 = vld [vmem:[%s11 + $0x8] sm:$0xff]
  %v577 = vld [vmem:[%s11 + $0x10] sm:$0xff]
  %v578 = vld [vmem:[%s11 + $0x18] sm:$0xff]
  %v579 = vld [vmem:[%s11 + $0x20] sm:$0xff]
  %v580 = vld [vmem:[%s11 + $0x28] sm:$0xff]
  %v581 = vld [vmem:[%s11 + $0x30] sm:$0xff]
  %v582 = vld [vmem:[%s11 + $0x38] sm:$0xff]
  %v583 = vld [vmem:[%s11 + $0x40] sm:$0xff]
  %v584 = vld [vmem:[%s11 + $0x48] sm:$0xff]
  %v585 = vld [vmem:[%s11 + $0x50] sm:$0xff]
  %v586 = vld [vmem:[%s11 + $0x58] sm:$0xff]
  %v587 = vld [vmem:[%s11 + $0x60] sm:$0xff]
  %v588 = vld [vmem:[%s11 + $0x68] sm:$0xff]
  %v589 = vld [vmem:[%s11 + $0x70] sm:$0xff]
  %v590 = vld [vmem:[%s11 + $0x78] sm:$0xff]
  %v591 = vld [vmem:[%s11 + $0x80] sm:$0xff]
  %v592 = vld [vmem:[%s11 + $0x88] sm:$0xff]
  %v593 = vld [vmem:[%s11 + $0x90] sm:$0xff]
  %v594 = vld [vmem:[%s11 + $0x98] sm:$0xff]
  %v595 = vld [vmem:[%s11 + $0xa0] sm:$0xff]
  %v596 = vld [vmem:[%s11 + $0xa8] sm:$0xff]
  %v597 = vld [vmem:[%s11 + $0xb0] sm:$0xff]
  %v598 = vld [vmem:[%s11 + $0xb8] sm:$0xff]
  %v599 = vld [vmem:[%s11 + $0xc0] sm:$0xf]
  %v600 = vmul.f32 %v575, 0.01
  %v601 = vmul.f32 %v576, 0.01
  %v602 = vmul.f32 %v577, 0.01
  %v603 = vmul.f32 %v578, 0.01
  %v604 = vmul.f32 %v579, 0.01
  %v605 = vmul.f32 %v580, 0.01
  %v606 = vmul.f32 %v581, 0.01
  %v607 = vmul.f32 %v582, 0.01
  %v608 = vmul.f32 %v583, 0.01
  %v609 = vmul.f32 %v584, 0.01
  %v610 = vmul.f32 %v585, 0.01
  %v611 = vmul.f32 %v586, 0.01
  %v612 = vmul.f32 %v587, 0.01
  %v613 = vmul.f32 %v588, 0.01
  %v614 = vmul.f32 %v589, 0.01
  %v615 = vmul.f32 %v590, 0.01
  %v616 = vmul.f32 %v591, 0.01
  %v617 = vmul.f32 %v592, 0.01
  %v618 = vmul.f32 %v593, 0.01
  %v619 = vmul.f32 %v594, 0.01
  %v620 = vmul.f32 %v595, 0.01
  %v621 = vmul.f32 %v596, 0.01
  %v622 = vmul.f32 %v597, 0.01
  %v623 = vmul.f32 %v598, 0.01
  %v624 = vmul.f32 %v599, 0.01
  %v625 = vadd.f32 %v550, %v600
  %v626 = vadd.f32 %v551, %v601
  %v627 = vadd.f32 %v552, %v602
  %v628 = vadd.f32 %v553, %v603
  %v629 = vadd.f32 %v554, %v604
  %v630 = vadd.f32 %v555, %v605
  %v631 = vadd.f32 %v556, %v606
  %v632 = vadd.f32 %v557, %v607
  %v633 = vadd.f32 %v558, %v608
  %v634 = vadd.f32 %v559, %v609
  %v635 = vadd.f32 %v560, %v610
  %v636 = vadd.f32 %v561, %v611
  %v637 = vadd.f32 %v562, %v612
  %v638 = vadd.f32 %v563, %v613
  %v639 = vadd.f32 %v564, %v614
  %v640 = vadd.f32 %v565, %v615
  %v641 = vadd.f32 %v566, %v616
  %v642 = vadd.f32 %v567, %v617
  %v643 = vadd.f32 %v568, %v618
  %v644 = vadd.f32 %v569, %v619
  %v645 = vadd.f32 %v570, %v620
  %v646 = vadd.f32 %v571, %v621
  %v647 = vadd.f32 %v572, %v622
  %v648 = vadd.f32 %v573, %v623
  %v649 = vadd.f32 %v574, %v624
  %650 = vst.msk [vmem:[%s51] sm:$0xff] %vm200, %v625
  %651 = vst.msk [vmem:[%s51 + $0x8] sm:$0xff] %vm200, %v626
  %652 = vst.msk [vmem:[%s51 + $0x10] sm:$0xff] %vm200, %v627
  %653 = vst.msk [vmem:[%s51 + $0x18] sm:$0xff] %vm200, %v628
  %654 = vst.msk [vmem:[%s51 + $0x20] sm:$0xff] %vm200, %v629
  %655 = vst.msk [vmem:[%s51 + $0x28] sm:$0xff] %vm200, %v630
  %656 = vst.msk [vmem:[%s51 + $0x30] sm:$0xff] %vm200, %v631
  %657 = vst.msk [vmem:[%s51 + $0x38] sm:$0xff] %vm200, %v632
  %658 = vst.msk [vmem:[%s51 + $0x40] sm:$0xff] %vm200, %v633
  %659 = vst.msk [vmem:[%s51 + $0x48] sm:$0xff] %vm200, %v634
  %660 = vst.msk [vmem:[%s51 + $0x50] sm:$0xff] %vm200, %v635
  %661 = vst.msk [vmem:[%s51 + $0x58] sm:$0xff] %vm200, %v636
  %662 = vst.msk [vmem:[%s51 + $0x60] sm:$0xff] %vm200, %v637
  %663 = vst.msk [vmem:[%s51 + $0x68] sm:$0xff] %vm200, %v638
  %664 = vst.msk [vmem:[%s51 + $0x70] sm:$0xff] %vm200, %v639
  %665 = vst.msk [vmem:[%s51 + $0x78] sm:$0xff] %vm200, %v640
  %666 = vst.msk [vmem:[%s51 + $0x80] sm:$0xff] %vm200, %v641
  %667 = vst.msk [vmem:[%s51 + $0x88] sm:$0xff] %vm200, %v642
  %668 = vst.msk [vmem:[%s51 + $0x90] sm:$0xff] %vm200, %v643
  %669 = vst.msk [vmem:[%s51 + $0x98] sm:$0xff] %vm200, %v644
  %670 = vst.msk [vmem:[%s51 + $0xa0] sm:$0xff] %vm200, %v645
  %671 = vst.msk [vmem:[%s51 + $0xa8] sm:$0xff] %vm200, %v646
  %672 = vst.msk [vmem:[%s51 + $0xb0] sm:$0xff] %vm200, %v647
  %673 = vst.msk [vmem:[%s51 + $0xb8] sm:$0xff] %vm200, %v648
  %vm674 = vcmask 519168
  %675 = vst.msk [vmem:[%s51 + $0xc0] sm:$0xf] %vm674, %v649
  %v676 = vld [vmem:[%s33] sm:$0xff]
  %v677 = vld [vmem:[%s33 + $0x8] sm:$0xff]
  %v678 = vld [vmem:[%s33 + $0x10] sm:$0xff]
  %v679 = vld [vmem:[%s33 + $0x18] sm:$0xff]
  %v680 = vld [vmem:[%s33 + $0x20] sm:$0xff]
  %v681 = vld [vmem:[%s33 + $0x28] sm:$0xff]
  %v682 = vld [vmem:[%s33 + $0x30] sm:$0xff]
  %v683 = vld [vmem:[%s33 + $0x38] sm:$0xff]
  %v684 = vld [vmem:[%s33 + $0x40] sm:$0xff]
  %v685 = vld [vmem:[%s33 + $0x48] sm:$0xff]
  %v686 = vld [vmem:[%s33 + $0x50] sm:$0xff]
  %v687 = vld [vmem:[%s33 + $0x58] sm:$0xff]
  %v688 = vld [vmem:[%s33 + $0x60] sm:$0xff]
  %v689 = vld [vmem:[%s33 + $0x68] sm:$0xff]
  %v690 = vld [vmem:[%s33 + $0x70] sm:$0xff]
  %v691 = vld [vmem:[%s33 + $0x78] sm:$0xff]
  %v692 = vmul.f32 %v676, 0.99
  %v693 = vmul.f32 %v677, 0.99
  %v694 = vmul.f32 %v678, 0.99
  %v695 = vmul.f32 %v679, 0.99
  %v696 = vmul.f32 %v680, 0.99
  %v697 = vmul.f32 %v681, 0.99
  %v698 = vmul.f32 %v682, 0.99
  %v699 = vmul.f32 %v683, 0.99
  %v700 = vmul.f32 %v684, 0.99
  %v701 = vmul.f32 %v685, 0.99
  %v702 = vmul.f32 %v686, 0.99
  %v703 = vmul.f32 %v687, 0.99
  %v704 = vmul.f32 %v688, 0.99
  %v705 = vmul.f32 %v689, 0.99
  %v706 = vmul.f32 %v690, 0.99
  %v707 = vmul.f32 %v691, 0.99
  %v708 = vld [vmem:[%s13] sm:$0xff]
  %v709 = vld [vmem:[%s13 + $0x8] sm:$0xff]
  %v710 = vld [vmem:[%s13 + $0x10] sm:$0xff]
  %v711 = vld [vmem:[%s13 + $0x18] sm:$0xff]
  %v712 = vld [vmem:[%s13 + $0x20] sm:$0xff]
  %v713 = vld [vmem:[%s13 + $0x28] sm:$0xff]
  %v714 = vld [vmem:[%s13 + $0x30] sm:$0xff]
  %v715 = vld [vmem:[%s13 + $0x38] sm:$0xff]
  %v716 = vld [vmem:[%s13 + $0x40] sm:$0xff]
  %v717 = vld [vmem:[%s13 + $0x48] sm:$0xff]
  %v718 = vld [vmem:[%s13 + $0x50] sm:$0xff]
  %v719 = vld [vmem:[%s13 + $0x58] sm:$0xff]
  %v720 = vld [vmem:[%s13 + $0x60] sm:$0xff]
  %v721 = vld [vmem:[%s13 + $0x68] sm:$0xff]
  %v722 = vld [vmem:[%s13 + $0x70] sm:$0xff]
  %v723 = vld [vmem:[%s13 + $0x78] sm:$0xff]
  %v724 = vmul.f32 %v708, 0.01
  %v725 = vmul.f32 %v709, 0.01
  %v726 = vmul.f32 %v710, 0.01
  %v727 = vmul.f32 %v711, 0.01
  %v728 = vmul.f32 %v712, 0.01
  %v729 = vmul.f32 %v713, 0.01
  %v730 = vmul.f32 %v714, 0.01
  %v731 = vmul.f32 %v715, 0.01
  %v732 = vmul.f32 %v716, 0.01
  %v733 = vmul.f32 %v717, 0.01
  %v734 = vmul.f32 %v718, 0.01
  %v735 = vmul.f32 %v719, 0.01
  %v736 = vmul.f32 %v720, 0.01
  %v737 = vmul.f32 %v721, 0.01
  %v738 = vmul.f32 %v722, 0.01
  %v739 = vmul.f32 %v723, 0.01
  %v740 = vadd.f32 %v692, %v724
  %v741 = vadd.f32 %v693, %v725
  %v742 = vadd.f32 %v694, %v726
  %v743 = vadd.f32 %v695, %v727
  %v744 = vadd.f32 %v696, %v728
  %v745 = vadd.f32 %v697, %v729
  %v746 = vadd.f32 %v698, %v730
  %v747 = vadd.f32 %v699, %v731
  %v748 = vadd.f32 %v700, %v732
  %v749 = vadd.f32 %v701, %v733
  %v750 = vadd.f32 %v702, %v734
  %v751 = vadd.f32 %v703, %v735
  %v752 = vadd.f32 %v704, %v736
  %v753 = vadd.f32 %v705, %v737
  %v754 = vadd.f32 %v706, %v738
  %v755 = vadd.f32 %v707, %v739
  %756 = vst [vmem:[%s53] sm:$0xff] %v740
  %757 = vst [vmem:[%s53 + $0x8] sm:$0xff] %v741
  %758 = vst [vmem:[%s53 + $0x10] sm:$0xff] %v742
  %759 = vst [vmem:[%s53 + $0x18] sm:$0xff] %v743
  %760 = vst [vmem:[%s53 + $0x20] sm:$0xff] %v744
  %761 = vst [vmem:[%s53 + $0x28] sm:$0xff] %v745
  %762 = vst [vmem:[%s53 + $0x30] sm:$0xff] %v746
  %763 = vst [vmem:[%s53 + $0x38] sm:$0xff] %v747
  %764 = vst [vmem:[%s53 + $0x40] sm:$0xff] %v748
  %765 = vst [vmem:[%s53 + $0x48] sm:$0xff] %v749
  %766 = vst [vmem:[%s53 + $0x50] sm:$0xff] %v750
  %767 = vst [vmem:[%s53 + $0x58] sm:$0xff] %v751
  %768 = vst [vmem:[%s53 + $0x60] sm:$0xff] %v752
  %769 = vst [vmem:[%s53 + $0x68] sm:$0xff] %v753
  %770 = vst [vmem:[%s53 + $0x70] sm:$0xff] %v754
  %771 = vst [vmem:[%s53 + $0x78] sm:$0xff] %v755
  %v772 = vld [vmem:[%s35] sm:$0x3]
  %v773 = vmul.f32 %v772, 0.99
  %v774 = vld [vmem:[%s15] sm:$0x3]
  %v775 = vmul.f32 %v774, 0.01
  %v776 = vadd.f32 %v773, %v775
  %777 = vst.msk [vmem:[%s55] sm:$0x3] %vm325, %v776
  %v778 = vld [vmem:[%s37] sm:$0xff]
  %v779 = vld [vmem:[%s37 + $0x8] sm:$0xff]
  %v780 = vld [vmem:[%s37 + $0x10] sm:$0xff]
  %v781 = vld [vmem:[%s37 + $0x18] sm:$0xff]
  %v782 = vld [vmem:[%s37 + $0x20] sm:$0xff]
  %v783 = vld [vmem:[%s37 + $0x28] sm:$0xff]
  %v784 = vld [vmem:[%s37 + $0x30] sm:$0xff]
  %v785 = vld [vmem:[%s37 + $0x38] sm:$0xff]
  %v786 = vld [vmem:[%s37 + $0x40] sm:$0xff]
  %v787 = vld [vmem:[%s37 + $0x48] sm:$0xff]
  %v788 = vld [vmem:[%s37 + $0x50] sm:$0xff]
  %v789 = vld [vmem:[%s37 + $0x58] sm:$0xff]
  %v790 = vld [vmem:[%s37 + $0x60] sm:$0xff]
  %v791 = vld [vmem:[%s37 + $0x68] sm:$0xff]
  %v792 = vld [vmem:[%s37 + $0x70] sm:$0xff]
  %v793 = vld [vmem:[%s37 + $0x78] sm:$0xff]
  %v794 = vld [vmem:[%s37 + $0x80] sm:$0xff]
  %v795 = vld [vmem:[%s37 + $0x88] sm:$0xff]
  %v796 = vld [vmem:[%s37 + $0x90] sm:$0xff]
  %v797 = vld [vmem:[%s37 + $0x98] sm:$0xff]
  %v798 = vld [vmem:[%s37 + $0xa0] sm:$0xff]
  %v799 = vld [vmem:[%s37 + $0xa8] sm:$0xff]
  %v800 = vld [vmem:[%s37 + $0xb0] sm:$0xff]
  %v801 = vld [vmem:[%s37 + $0xb8] sm:$0xff]
  %v802 = vld [vmem:[%s37 + $0xc0] sm:$0xff]
  %v803 = vld [vmem:[%s37 + $0xc8] sm:$0xff]
  %v804 = vld [vmem:[%s37 + $0xd0] sm:$0xff]
  %v805 = vld [vmem:[%s37 + $0xd8] sm:$0xff]
  %v806 = vld [vmem:[%s37 + $0xe0] sm:$0xff]
  %v807 = vld [vmem:[%s37 + $0xe8] sm:$0xff]
  %v808 = vld [vmem:[%s37 + $0xf0] sm:$0xff]
  %v809 = vld [vmem:[%s37 + $0xf8] sm:$0xff]
  %v810 = vmul.f32 %v778, 0.99
  %v811 = vmul.f32 %v779, 0.99
  %v812 = vmul.f32 %v780, 0.99
  %v813 = vmul.f32 %v781, 0.99
  %v814 = vmul.f32 %v782, 0.99
  %v815 = vmul.f32 %v783, 0.99
  %v816 = vmul.f32 %v784, 0.99
  %v817 = vmul.f32 %v785, 0.99
  %v818 = vmul.f32 %v786, 0.99
  %v819 = vmul.f32 %v787, 0.99
  %v820 = vmul.f32 %v788, 0.99
  %v821 = vmul.f32 %v789, 0.99
  %v822 = vmul.f32 %v790, 0.99
  %v823 = vmul.f32 %v791, 0.99
  %v824 = vmul.f32 %v792, 0.99
  %v825 = vmul.f32 %v793, 0.99
  %v826 = vmul.f32 %v794, 0.99
  %v827 = vmul.f32 %v795, 0.99
  %v828 = vmul.f32 %v796, 0.99
  %v829 = vmul.f32 %v797, 0.99
  %v830 = vmul.f32 %v798, 0.99
  %v831 = vmul.f32 %v799, 0.99
  %v832 = vmul.f32 %v800, 0.99
  %v833 = vmul.f32 %v801, 0.99
  %v834 = vmul.f32 %v802, 0.99
  %v835 = vmul.f32 %v803, 0.99
  %v836 = vmul.f32 %v804, 0.99
  %v837 = vmul.f32 %v805, 0.99
  %v838 = vmul.f32 %v806, 0.99
  %v839 = vmul.f32 %v807, 0.99
  %v840 = vmul.f32 %v808, 0.99
  %v841 = vmul.f32 %v809, 0.99
  %v842 = vld [vmem:[%s17] sm:$0xff]
  %v843 = vld [vmem:[%s17 + $0x8] sm:$0xff]
  %v844 = vld [vmem:[%s17 + $0x10] sm:$0xff]
  %v845 = vld [vmem:[%s17 + $0x18] sm:$0xff]
  %v846 = vld [vmem:[%s17 + $0x20] sm:$0xff]
  %v847 = vld [vmem:[%s17 + $0x28] sm:$0xff]
  %v848 = vld [vmem:[%s17 + $0x30] sm:$0xff]
  %v849 = vld [vmem:[%s17 + $0x38] sm:$0xff]
  %v850 = vld [vmem:[%s17 + $0x40] sm:$0xff]
  %v851 = vld [vmem:[%s17 + $0x48] sm:$0xff]
  %v852 = vld [vmem:[%s17 + $0x50] sm:$0xff]
  %v853 = vld [vmem:[%s17 + $0x58] sm:$0xff]
  %v854 = vld [vmem:[%s17 + $0x60] sm:$0xff]
  %v855 = vld [vmem:[%s17 + $0x68] sm:$0xff]
  %v856 = vld [vmem:[%s17 + $0x70] sm:$0xff]
  %v857 = vld [vmem:[%s17 + $0x78] sm:$0xff]
  %v858 = vld [vmem:[%s17 + $0x80] sm:$0xff]
  %v859 = vld [vmem:[%s17 + $0x88] sm:$0xff]
  %v860 = vld [vmem:[%s17 + $0x90] sm:$0xff]
  %v861 = vld [vmem:[%s17 + $0x98] sm:$0xff]
  %v862 = vld [vmem:[%s17 + $0xa0] sm:$0xff]
  %v863 = vld [vmem:[%s17 + $0xa8] sm:$0xff]
  %v864 = vld [vmem:[%s17 + $0xb0] sm:$0xff]
  %v865 = vld [vmem:[%s17 + $0xb8] sm:$0xff]
  %v866 = vld [vmem:[%s17 + $0xc0] sm:$0xff]
  %v867 = vld [vmem:[%s17 + $0xc8] sm:$0xff]
  %v868 = vld [vmem:[%s17 + $0xd0] sm:$0xff]
  %v869 = vld [vmem:[%s17 + $0xd8] sm:$0xff]
  %v870 = vld [vmem:[%s17 + $0xe0] sm:$0xff]
  %v871 = vld [vmem:[%s17 + $0xe8] sm:$0xff]
  %v872 = vld [vmem:[%s17 + $0xf0] sm:$0xff]
  %v873 = vld [vmem:[%s17 + $0xf8] sm:$0xff]
  %v874 = vmul.f32 %v842, 0.01
  %v875 = vmul.f32 %v843, 0.01
  %v876 = vmul.f32 %v844, 0.01
  %v877 = vmul.f32 %v845, 0.01
  %v878 = vmul.f32 %v846, 0.01
  %v879 = vmul.f32 %v847, 0.01
  %v880 = vmul.f32 %v848, 0.01
  %v881 = vmul.f32 %v849, 0.01
  %v882 = vmul.f32 %v850, 0.01
  %v883 = vmul.f32 %v851, 0.01
  %v884 = vmul.f32 %v852, 0.01
  %v885 = vmul.f32 %v853, 0.01
  %v886 = vmul.f32 %v854, 0.01
  %v887 = vmul.f32 %v855, 0.01
  %v888 = vmul.f32 %v856, 0.01
  %v889 = vmul.f32 %v857, 0.01
  %v890 = vmul.f32 %v858, 0.01
  %v891 = vmul.f32 %v859, 0.01
  %v892 = vmul.f32 %v860, 0.01
  %v893 = vmul.f32 %v861, 0.01
  %v894 = vmul.f32 %v862, 0.01
  %v895 = vmul.f32 %v863, 0.01
  %v896 = vmul.f32 %v864, 0.01
  %v897 = vmul.f32 %v865, 0.01
  %v898 = vmul.f32 %v866, 0.01
  %v899 = vmul.f32 %v867, 0.01
  %v900 = vmul.f32 %v868, 0.01
  %v901 = vmul.f32 %v869, 0.01
  %v902 = vmul.f32 %v870, 0.01
  %v903 = vmul.f32 %v871, 0.01
  %v904 = vmul.f32 %v872, 0.01
  %v905 = vmul.f32 %v873, 0.01
  %v906 = vadd.f32 %v810, %v874
  %v907 = vadd.f32 %v811, %v875
  %v908 = vadd.f32 %v812, %v876
  %v909 = vadd.f32 %v813, %v877
  %v910 = vadd.f32 %v814, %v878
  %v911 = vadd.f32 %v815, %v879
  %v912 = vadd.f32 %v816, %v880
  %v913 = vadd.f32 %v817, %v881
  %v914 = vadd.f32 %v818, %v882
  %v915 = vadd.f32 %v819, %v883
  %v916 = vadd.f32 %v820, %v884
  %v917 = vadd.f32 %v821, %v885
  %v918 = vadd.f32 %v822, %v886
  %v919 = vadd.f32 %v823, %v887
  %v920 = vadd.f32 %v824, %v888
  %v921 = vadd.f32 %v825, %v889
  %v922 = vadd.f32 %v826, %v890
  %v923 = vadd.f32 %v827, %v891
  %v924 = vadd.f32 %v828, %v892
  %v925 = vadd.f32 %v829, %v893
  %v926 = vadd.f32 %v830, %v894
  %v927 = vadd.f32 %v831, %v895
  %v928 = vadd.f32 %v832, %v896
  %v929 = vadd.f32 %v833, %v897
  %v930 = vadd.f32 %v834, %v898
  %v931 = vadd.f32 %v835, %v899
  %v932 = vadd.f32 %v836, %v900
  %v933 = vadd.f32 %v837, %v901
  %v934 = vadd.f32 %v838, %v902
  %v935 = vadd.f32 %v839, %v903
  %v936 = vadd.f32 %v840, %v904
  %v937 = vadd.f32 %v841, %v905
  %938 = vst [vmem:[%s57] sm:$0xff] %v906
  %939 = vst [vmem:[%s57 + $0x8] sm:$0xff] %v907
  %940 = vst [vmem:[%s57 + $0x10] sm:$0xff] %v908
  %941 = vst [vmem:[%s57 + $0x18] sm:$0xff] %v909
  %942 = vst [vmem:[%s57 + $0x20] sm:$0xff] %v910
  %943 = vst [vmem:[%s57 + $0x28] sm:$0xff] %v911
  %944 = vst [vmem:[%s57 + $0x30] sm:$0xff] %v912
  %945 = vst [vmem:[%s57 + $0x38] sm:$0xff] %v913
  %946 = vst [vmem:[%s57 + $0x40] sm:$0xff] %v914
  %947 = vst [vmem:[%s57 + $0x48] sm:$0xff] %v915
  %948 = vst [vmem:[%s57 + $0x50] sm:$0xff] %v916
  %949 = vst [vmem:[%s57 + $0x58] sm:$0xff] %v917
  %950 = vst [vmem:[%s57 + $0x60] sm:$0xff] %v918
  %951 = vst [vmem:[%s57 + $0x68] sm:$0xff] %v919
  %952 = vst [vmem:[%s57 + $0x70] sm:$0xff] %v920
  %953 = vst [vmem:[%s57 + $0x78] sm:$0xff] %v921
  %954 = vst [vmem:[%s57 + $0x80] sm:$0xff] %v922
  %955 = vst [vmem:[%s57 + $0x88] sm:$0xff] %v923
  %956 = vst [vmem:[%s57 + $0x90] sm:$0xff] %v924
  %957 = vst [vmem:[%s57 + $0x98] sm:$0xff] %v925
  %958 = vst [vmem:[%s57 + $0xa0] sm:$0xff] %v926
  %959 = vst [vmem:[%s57 + $0xa8] sm:$0xff] %v927
  %960 = vst [vmem:[%s57 + $0xb0] sm:$0xff] %v928
  %961 = vst [vmem:[%s57 + $0xb8] sm:$0xff] %v929
  %962 = vst [vmem:[%s57 + $0xc0] sm:$0xff] %v930
  %963 = vst [vmem:[%s57 + $0xc8] sm:$0xff] %v931
  %964 = vst [vmem:[%s57 + $0xd0] sm:$0xff] %v932
  %965 = vst [vmem:[%s57 + $0xd8] sm:$0xff] %v933
  %966 = vst [vmem:[%s57 + $0xe0] sm:$0xff] %v934
  %967 = vst [vmem:[%s57 + $0xe8] sm:$0xff] %v935
  %968 = vst [vmem:[%s57 + $0xf0] sm:$0xff] %v936
  %969 = vst [vmem:[%s57 + $0xf8] sm:$0xff] %v937
  %v970 = vld [vmem:[%s39] sm:$0x1]
  %v971 = vmul.f32 %v970, 0.99
  %v972 = vld [vmem:[%s19] sm:$0x1]
  %v973 = vmul.f32 %v972, 0.01
  %v974 = vadd.f32 %v971, %v973
  %975 = vst [vmem:[%s59] sm:$0x1] %v974
  // Predicated region
  $region82: #{tpu_custom_call.1} parent=0 // pred_check
    _
  $region83: #{tpu_custom_call.1} parent=0 // pred_check_branch
    %977 = sbr.rel (0) target = $region85
  $region84: #{tpu_custom_call.1} parent=0 // pred_region
    _
  $region85: #{tpu_custom_call.1} parent=0 // pred_fallthru
    _
  // Predicated region
  $region86: #{tpu_custom_call.1} parent=0 // pred_check
    _
  $region87: #{tpu_custom_call.1} parent=0 // pred_check_branch
    %979 = sbr.rel (0) target = $region89
  $region88: #{tpu_custom_call.1} parent=0 // pred_region
    _
  $region89: #{tpu_custom_call.1} parent=0 // pred_fallthru
    _
  // Predicated region
  $region90: #{tpu_custom_call.1} parent=0 // pred_check
    _
  $region91: #{tpu_custom_call.1} parent=0 // pred_check_branch
    %981 = sbr.rel (0) target = $region93
  $region92: #{tpu_custom_call.1} parent=0 // pred_region
    _
  $region93: #{tpu_custom_call.1} parent=0 // pred_fallthru
    _
  // Predicated region
  $region94: #{tpu_custom_call.1} parent=0 // pred_check
    _
  $region95: #{tpu_custom_call.1} parent=0 // pred_check_branch
    %983 = sbr.rel (0) target = $region97
  $region96: #{tpu_custom_call.1} parent=0 // pred_region
    _
  $region97: #{tpu_custom_call.1} parent=0 // pred_fallthru
    _
  // Predicated region
  $region98: #{tpu_custom_call.1} parent=0 // pred_check
    _
  $region99: #{tpu_custom_call.1} parent=0 // pred_check_branch
    %985 = sbr.rel (0) target = $region101
  $region100: #{tpu_custom_call.1} parent=0 // pred_region
    _
  $region101: #{tpu_custom_call.1} parent=0 // pred_fallthru
    _
  // Predicated region
  $region102: #{tpu_custom_call.1} parent=0 // pred_check
    _
  $region103: #{tpu_custom_call.1} parent=0 // pred_check_branch
    %987 = sbr.rel (0) target = $region105
  $region104: #{tpu_custom_call.1} parent=0 // pred_region
    _
  $region105: #{tpu_custom_call.1} parent=0 // pred_fallthru
    _
  // Predicated region
  $region106: #{tpu_custom_call.1} parent=0 // pred_check
    _
  $region107: #{tpu_custom_call.1} parent=0 // pred_check_branch
    %989 = sbr.rel (0) target = $region109
  $region108: #{tpu_custom_call.1} parent=0 // pred_region
    _
  $region109: #{tpu_custom_call.1} parent=0 // pred_fallthru
    _
  // Predicated region
  $region110: #{tpu_custom_call.1} parent=0 // pred_check
    _
  $region111: #{tpu_custom_call.1} parent=0 // pred_check_branch
    %991 = sbr.rel (0) target = $region113
  $region112: #{tpu_custom_call.1} parent=0 // pred_region
    _
  $region113: #{tpu_custom_call.1} parent=0 // pred_fallthru
    _
  // Predicated region
  $region114: #{tpu_custom_call.1} parent=0 // pred_check
    _
  $region115: #{tpu_custom_call.1} parent=0 // pred_check_branch
    %993 = sbr.rel (0) target = $region117
  $region116: #{tpu_custom_call.1} parent=0 // pred_region
    _
  $region117: #{tpu_custom_call.1} parent=0 // pred_fallthru
    _
  // Predicated region
  $region118: #{tpu_custom_call.1} parent=0 // pred_check
    _
  $region119: #{tpu_custom_call.1} parent=0 // pred_check_branch
    %995 = sbr.rel (0) target = $region121
  $region120: #{tpu_custom_call.1} parent=0 // pred_region
    _
  $region121: #{tpu_custom_call.1} parent=0 // pred_fallthru
    _
  // Predicated region
  $region122: #{tpu_custom_call.1} parent=0 // pred_check
    _
  $region123: #{tpu_custom_call.1} parent=0 // pred_check_branch
    %997 = sbr.rel (0) target = $region125
  $region124: #{tpu_custom_call.1} parent=0 // pred_region
    _
  $region125: #{tpu_custom_call.1} parent=0 // pred_fallthru
    _
  // Predicated region
  $region126: #{tpu_custom_call.1} parent=0 // pred_check
    _
  $region127: #{tpu_custom_call.1} parent=0 // pred_check_branch
    %999 = sbr.rel (0) target = $region129
  $region128: #{tpu_custom_call.1} parent=0 // pred_region
    _
  $region129: #{tpu_custom_call.1} parent=0 // pred_fallthru
    _
  // Predicated region
  $region130: #{tpu_custom_call.1} parent=0 // pred_check
    _
  $region131: #{tpu_custom_call.1} parent=0 // pred_check_branch
    %1001 = sbr.rel (0) target = $region133
  $region132: #{tpu_custom_call.1} parent=0 // pred_region
    _
  $region133: #{tpu_custom_call.1} parent=0 // pred_fallthru
    _
  // Predicated region
  $region134: #{tpu_custom_call.1} parent=0 // pred_check
    _
  $region135: #{tpu_custom_call.1} parent=0 // pred_check_branch
    %1003 = sbr.rel (0) target = $region137
  $region136: #{tpu_custom_call.1} parent=0 // pred_region
    _
  $region137: #{tpu_custom_call.1} parent=0 // pred_fallthru
    _
  // Predicated region
  $region138: #{tpu_custom_call.1} parent=0 // pred_check
    _
  $region139: #{tpu_custom_call.1} parent=0 // pred_check_branch
    %1005 = sbr.rel (0) target = $region141
  $region140: #{tpu_custom_call.1} parent=0 // pred_region
    _
  $region141: #{tpu_custom_call.1} parent=0 // pred_fallthru
    _
  // Predicated region
  $region142: #{tpu_custom_call.1} parent=0 // pred_check
    _
  $region143: #{tpu_custom_call.1} parent=0 // pred_check_branch
    %1007 = sbr.rel (0) target = $region145
  $region144: #{tpu_custom_call.1} parent=0 // pred_region
    _
  $region145: #{tpu_custom_call.1} parent=0 // pred_fallthru
    _
  // Predicated region
  $region146: #{tpu_custom_call.1} parent=0 // pred_check
    _
  $region147: #{tpu_custom_call.1} parent=0 // pred_check_branch
    %1009 = sbr.rel (0) target = $region149
  $region148: #{tpu_custom_call.1} parent=0 // pred_region
    _
  $region149: #{tpu_custom_call.1} parent=0 // pred_fallthru
    _
  // Predicated region
  $region150: #{tpu_custom_call.1} parent=0 // pred_check
    _
  $region151: #{tpu_custom_call.1} parent=0 // pred_check_branch
    %1011 = sbr.rel (0) target = $region153
  $region152: #{tpu_custom_call.1} parent=0 // pred_region
    _
  $region153: #{tpu_custom_call.1} parent=0 // pred_fallthru
    _
  // Predicated region
  $region154: #{tpu_custom_call.1} parent=0 // pred_check
    _
  $region155: #{tpu_custom_call.1} parent=0 // pred_check_branch
    %1013 = sbr.rel (0) target = $region157
  $region156: #{tpu_custom_call.1} parent=0 // pred_region
    _
  $region157: #{tpu_custom_call.1} parent=0 // pred_fallthru
    _
  // Predicated region
  $region158: #{tpu_custom_call.1} parent=0 // pred_check
    _
  $region159: #{tpu_custom_call.1} parent=0 // pred_check_branch
    %1015 = sbr.rel (0) target = $region161
  $region160: #{tpu_custom_call.1} parent=0 // pred_region
    _
  $region161: #{tpu_custom_call.1} parent=0 // pred_fallthru
    _

</llo_original>
